<compile_context>
chip_gen: v7x
topology: tpu7x:2x2x1
jax: 0.10.0
libtpu: 0.0.40
codegen_flags: <defaults>
</compile_context>

<pallas_src>
import functools

import numpy as np
import jax
import jax.numpy as jnp
from jax.experimental import pallas as pl
from jax.experimental.pallas import tpu as pltpu  # noqa: F401  (kept for scratch/params if shapes grow)

_BP = 8  # f32 sublane tile; batch rows are padded to this on the recurrence path


# ----------------------------------------------------------------------------
# Fused Pallas kernel: (pre_rnn + GRU input proj) -> GRU recurrence -> post_rnn
# ----------------------------------------------------------------------------
def _pose_lifter_kernel(x_ref,                  # (B, T, ipt)
                        p_ref, q_ref,           # (T*BP, B*T), (B*T, T*BP) 0/1 row perms
                        w_f_ref, b_f_ref,       # (ipt, 3*H2), (1, 3*H2)  fused pre_rnn+W_ih
                        whh_ref, b_hh_n_ref,    # (H2, 3*H2) bf16, (1, H2)
                        w_post_ref, b_post_ref,  # (H2, opt), (1, opt)
                        out_ref,                # (B, T, opt)
                        hn_ref,                 # (1, B, H2)
                        *, seq_len, batch):
    T, B, BP = seq_len, batch, _BP
    H2 = whh_ref.shape[0]
    D = x_ref.shape[-1]
    opt = w_post_ref.shape[1]

    # (1) fused pre_rnn + GRU input projection for every (b, t) row at once.
    #     b_f already contains b_ih plus the r/z parts of b_hh.
    x2 = x_ref[...].reshape(B * T, D)
    gx_bm = jnp.dot(x2, w_f_ref[...],
                    preferred_element_type=jnp.float32) + b_f_ref[...]   # (B*T, 3H2)

    # (2) permute rows into padded time-major layout (row = t*BP + b; padded
    #     rows are zero) so every per-step slice below is an aligned (8, 3H2) tile.
    gx = jnp.dot(p_ref[...], gx_bm,
                 preferred_element_type=jnp.float32)                     # (T*BP, 3H2)

    # (3) recurrence, fully unrolled (T is small and static).  The only thing
    #     left on the serial critical path is one bf16 MXU matmul per step.
    # TODO(synk): hold whh resident in MXU weight staging registers
    #             (pltpu.matmul_push_rhs / matmul_acc_lhs) across the loop;
    #             omitted because staging tile counts differ per chip gen.
    # TODO(synk): if T/B grow, switch to lax.fori_loop(..., unroll=2..4) over a
    #             (T, BP, .) layout and add a batch grid axis (v7x megacore).
    b_hh_n = jnp.broadcast_to(b_hh_n_ref[...], (BP, H2))   # hoisted, done once
    whh = whh_ref[...]                                      # bf16 (H2, 3H2)

    ys = []
    # t = 0: h0 == 0, so the recurrent matmul is exactly zero -> skip it.
    gxt = gx[0:BP, :]
    r = jax.nn.sigmoid(gxt[:, 0 * H2:1 * H2])
    z = jax.nn.sigmoid(gxt[:, 1 * H2:2 * H2])
    n = jnp.tanh(gxt[:, 2 * H2:3 * H2] + r * b_hh_n)
    h = n - z * n                                           # (1 - z) * n
    ys.append(h)

    for t in range(1, T):
        gh = jnp.dot(h.astype(jnp.bfloat16), whh,
                     preferred_element_type=jnp.float32)    # (BP, 3H2), f32 acc
        gxt = gx[t * BP:(t + 1) * BP, :]
        r = jax.nn.sigmoid(gxt[:, 0 * H2:1 * H2] + gh[:, 0 * H2:1 * H2])
        z = jax.nn.sigmoid(gxt[:, 1 * H2:2 * H2] + gh[:, 1 * H2:2 * H2])
        n = jnp.tanh(gxt[:, 2 * H2:3 * H2] + r * (gh[:, 2 * H2:3 * H2] + b_hh_n))
        h = n + z * (h - n)
        ys.append(h)

    # final hidden state, shaped like nn.GRU's h_n: (1, B, H2)
    hn_ref[...] = h[:B, :].reshape(1, B, H2).astype(hn_ref.dtype)

    # (4) post_rnn over all timesteps at once; rows permuted back to batch-major
    #     so the output is stored directly in (B, T, opt) order.
    y_tm = jnp.concatenate(ys, axis=0)                                    # (T*BP, H2)
    y_bm = jnp.dot(q_ref[...], y_tm, preferred_element_type=jnp.float32)  # (B*T, H2)
    out = jnp.dot(y_bm, w_post_ref[...],
                  preferred_element_type=jnp.float32) + b_post_ref[...]   # (B*T, opt)
    out_ref[...] = out.reshape(B, T, opt).astype(out_ref.dtype)


# ----------------------------------------------------------------------------
# Wrapper: single gridless pallas_call, no boundary transposes / reshapes.
# ----------------------------------------------------------------------------
def pose_lifter_forward(fparams, x):
    """x: (B, T, ipt_dim) -> {'pose_3d': (B,T,opt), 'encoder_hidden': (1,B,H2)}."""
    B, T, D = x.shape
    H2 = fparams['whh_bf16'].shape[0]
    opt = fparams['w_post'].shape[1]
    assert B <= _BP, "TODO(synk): B > 8 needs batch tiling (grid over batch)"

    # Trace-time constant 0/1 permutation matrices (no runtime XLA ops):
    #   P: batch-major rows (b*T + t) -> padded time-major rows (t*BP + b)
    #   Q: padded time-major rows      -> batch-major rows
    P = np.zeros((T * _BP, B * T), np.float32)
    Q = np.zeros((B * T, T * _BP), np.float32)
    for b in range(B):
        for t in range(T):
            P[t * _BP + b, b * T + t] = 1.0
            Q[b * T + t, t * _BP + b] = 1.0

    out, hn = pl.pallas_call(
        functools.partial(_pose_lifter_kernel, seq_len=T, batch=B),
        out_shape=(
            jax.ShapeDtypeStruct((B, T, opt), x.dtype),
            jax.ShapeDtypeStruct((1, B, H2), x.dtype),
        ),
    )(x, P, Q,
      fparams['w_f'], fparams['b_f'],
      fparams['whh_bf16'], fparams['b_hh_n'],
      fparams['w_post'], fparams['b_post'])

    return {'pose_3d': out, 'encoder_hidden': hn}


# ----------------------------------------------------------------------------
# Parameter prep: fold pre_rnn into the GRU input projection (done once).
# ----------------------------------------------------------------------------
def fuse_params(p):
    H2 = p['whh'].shape[0]
    w_f = p['w_pre'] @ p['wih']                                   # (ipt, 3H2)
    # b_ih fully + r/z parts of b_hh; the n part of b_hh must stay inside
    # r * (h @ W_hn + b_hn) and is passed separately.
    b_f = (p['b_pre'] @ p['wih'] + p['b_ih']
           + jnp.concatenate([p['b_hh'][:, :2 * H2],
                              jnp.zeros((1, H2), p['b_hh'].dtype)], axis=1))
    return {
        'w_f': w_f,
        'b_f': b_f,
        'whh_bf16': p['whh'].astype(jnp.bfloat16),
        'b_hh_n': p['b_hh'][:, 2 * H2:],
        'w_post': p['w_post'],
        'b_post': p['b_post'],
    }


# ----------------------------------------------------------------------------
# Deterministic parameter init (shapes follow the PyTorch __init__, transposed)
# ----------------------------------------------------------------------------
def init_params(key, ipt_dim, opt_dim, hid_dim):
    H2 = hid_dim * 2
    ks = jax.random.split(key, 8)

    def u(k, shape, fan_in):
        bound = 1.0 / jnp.sqrt(fan_in)
        return jax.random.uniform(k, shape, jnp.float32, -bound, bound)

    return {
        # pre_rnn: Linear(ipt_dim, hid_dim)
        'w_pre': u(ks[0], (ipt_dim, hid_dim), ipt_dim),
        'b_pre': u(ks[1], (1, hid_dim), ipt_dim),
        # GRU(hid_dim, H2), gate order r|z|n, weights stored transposed
        'wih':   u(ks[2], (hid_dim, 3 * H2), H2),
        'b_ih':  u(ks[3], (1, 3 * H2), H2),
        'whh':   u(ks[4], (H2, 3 * H2), H2),
        'b_hh':  u(ks[5], (1, 3 * H2), H2),
        # post_rnn: Linear(H2, opt_dim)   (unidirectional -> factor 1)
        'w_post': u(ks[6], (H2, opt_dim), H2),
        'b_post': u(ks[7], (1, opt_dim), H2),
    }


# ----------------------------------------------------------------------------
# Pure-JAX reference (unfused, f32) for a correctness check
# ----------------------------------------------------------------------------
def ref_forward(params, x):
    B, T, D = x.shape
    H2 = params['whh'].shape[0]
    pre = x @ params['w_pre'] + params['b_pre'][0]
    xt = jnp.transpose(pre, (1, 0, 2))             # (T, B, hid)

    def step(h, x_t):
        gx = x_t @ params['wih'] + params['b_ih'][0]
        gh = h @ params['whh'] + params['b_hh'][0]
        r = jax.nn.sigmoid(gx[:, :H2] + gh[:, :H2])
        z = jax.nn.sigmoid(gx[:, H2:2 * H2] + gh[:, H2:2 * H2])
        n = jnp.tanh(gx[:, 2 * H2:] + r * gh[:, 2 * H2:])
        h = (1.0 - z) * n + z * h
        return h, h

    h_last, ys = jax.lax.scan(step, jnp.zeros((B, H2), x.dtype), xt)
    y = jnp.transpose(ys, (1, 0, 2))               # (B, T, H2)
    out = y @ params['w_post'] + params['b_post'][0]
    return out, h_last[None]


# ----------------------------------------------------------------------------
if __name__ == "__main__":
    B, T = 2, 8
    ipt_dim, opt_dim, hid_dim = 34, 51, 64          # hid_dim=64 -> H2=128 (lane-aligned gates)
    H2 = hid_dim * 2

    key = jax.random.PRNGKey(0)
    kp, kx = jax.random.split(key)
    params = init_params(kp, ipt_dim, opt_dim, hid_dim)
    fused = fuse_params(params)                     # one-time parameter fold
    x = jax.random.normal(kx, (B, T, ipt_dim), jnp.float32)

    fwd = jax.jit(pose_lifter_forward)
    out = fwd(fused, x)
    jax.block_until_ready(out)

    # sanity check against the pure-JAX (f32, unfused) reference
    ref_out, ref_hidden = ref_forward(params, x)
    assert out['pose_3d'].shape == (B, T, opt_dim)
    assert out['encoder_hidden'].shape == (1, B, H2)
    # tolerance loosened because the recurrent matmul uses bf16 MXU operands
    assert jnp.allclose(out['pose_3d'], ref_out, atol=2e-2, rtol=2e-2)
    assert jnp.allclose(out['encoder_hidden'], ref_hidden, atol=2e-2, rtol=2e-2)

    print("KERNEL_OK")
</pallas_src>

<mosaic_0001>
module attributes {stable_mosaic.version = 11 : i64} {
  func.func @_pose_lifter_kernel(%arg0: memref<2x8x34xf32, #tpu.memory_space<vmem>>, %arg1: memref<64x16xf32, #tpu.memory_space<vmem>>, %arg2: memref<16x64xf32, #tpu.memory_space<vmem>>, %arg3: memref<34x384xf32, #tpu.memory_space<vmem>>, %arg4: memref<1x384xf32, #tpu.memory_space<vmem>>, %arg5: memref<128x384xbf16, #tpu.memory_space<vmem>>, %arg6: memref<1x128xf32, #tpu.memory_space<vmem>>, %arg7: memref<128x51xf32, #tpu.memory_space<vmem>>, %arg8: memref<1x51xf32, #tpu.memory_space<vmem>>, %arg9: memref<2x8x51xf32, #tpu.memory_space<vmem>>, %arg10: memref<1x2x128xf32, #tpu.memory_space<vmem>>) attributes {dimension_semantics = [], scalar_prefetch = 0 : i64, scratch_operands = 0 : i64, tpu.core_type = #tpu.core_type<tc>} {
    %c0 = arith.constant 0 : index
    %c0_0 = arith.constant 0 : index
    %c0_1 = arith.constant 0 : index
    %0 = vector.load %arg0[%c0, %c0_0, %c0_1] : memref<2x8x34xf32, #tpu.memory_space<vmem>>, vector<2x8x34xf32>
    %1 = vector.shape_cast %0 : vector<2x8x34xf32> to vector<16x34xf32>
    %c0_2 = arith.constant 0 : index
    %c0_3 = arith.constant 0 : index
    %2 = vector.load %arg3[%c0_2, %c0_3] : memref<34x384xf32, #tpu.memory_space<vmem>>, vector<34x384xf32>
    %cst = arith.constant dense<0.000000e+00> : vector<16x384xf32>
    %3 = tpu.matmul %1, %2, %cst {dimension_numbers = #tpu.dot_dimension_numbers<[1], [0], [0], [1], [0, 0, 1, 1], [], []>} : vector<16x34xf32>, vector<34x384xf32>, vector<16x384xf32> -> vector<16x384xf32>
    %c0_4 = arith.constant 0 : index
    %c0_5 = arith.constant 0 : index
    %4 = vector.load %arg4[%c0_4, %c0_5] : memref<1x384xf32, #tpu.memory_space<vmem>>, vector<1x384xf32>
    %5 = vector.broadcast %4 : vector<1x384xf32> to vector<16x384xf32>
    %6 = arith.addf %3, %5 : vector<16x384xf32>
    %c0_6 = arith.constant 0 : index
    %c0_7 = arith.constant 0 : index
    %7 = vector.load %arg1[%c0_6, %c0_7] : memref<64x16xf32, #tpu.memory_space<vmem>>, vector<64x16xf32>
    %cst_8 = arith.constant dense<0.000000e+00> : vector<64x384xf32>
    %8 = tpu.matmul %7, %6, %cst_8 {dimension_numbers = #tpu.dot_dimension_numbers<[1], [0], [0], [1], [0, 0, 1, 1], [], []>} : vector<64x16xf32>, vector<16x384xf32>, vector<64x384xf32> -> vector<64x384xf32>
    %c0_9 = arith.constant 0 : index
    %c0_10 = arith.constant 0 : index
    %9 = vector.load %arg6[%c0_9, %c0_10] : memref<1x128xf32, #tpu.memory_space<vmem>>, vector<1x128xf32>
    %10 = vector.shape_cast %9 : vector<1x128xf32> to vector<1x128xf32>
    %11 = vector.broadcast %10 : vector<1x128xf32> to vector<8x128xf32>
    %c0_11 = arith.constant 0 : index
    %c0_12 = arith.constant 0 : index
    %12 = vector.load %arg5[%c0_11, %c0_12] : memref<128x384xbf16, #tpu.memory_space<vmem>>, vector<128x384xbf16>
    %13 = vector.extract_strided_slice %8 {offsets = [0, 0], sizes = [8, 384], strides = [1, 1]} : vector<64x384xf32> to vector<8x384xf32>
    %14 = vector.extract_strided_slice %13 {offsets = [0, 0], sizes = [8, 128], strides = [1, 1]} : vector<8x384xf32> to vector<8x128xf32>
    %15 = arith.negf %14 : vector<8x128xf32>
    %16 = math.exp %15 : vector<8x128xf32>
    %cst_13 = arith.constant 1.000000e+00 : f32
    %17 = vector.broadcast %cst_13 : f32 to vector<8x128xf32>
    %18 = arith.addf %17, %16 : vector<8x128xf32>
    %19 = arith.divf %17, %18 : vector<8x128xf32>
    %20 = vector.extract_strided_slice %13 {offsets = [0, 128], sizes = [8, 128], strides = [1, 1]} : vector<8x384xf32> to vector<8x128xf32>
    %21 = arith.negf %20 : vector<8x128xf32>
    %22 = math.exp %21 : vector<8x128xf32>
    %cst_14 = arith.constant 1.000000e+00 : f32
    %23 = vector.broadcast %cst_14 : f32 to vector<8x128xf32>
    %24 = arith.addf %23, %22 : vector<8x128xf32>
    %25 = arith.divf %23, %24 : vector<8x128xf32>
    %26 = vector.extract_strided_slice %13 {offsets = [0, 256], sizes = [8, 128], strides = [1, 1]} : vector<8x384xf32> to vector<8x128xf32>
    %27 = arith.mulf %19, %11 : vector<8x128xf32>
    %28 = arith.addf %26, %27 : vector<8x128xf32>
    %29 = math.tanh %28 : vector<8x128xf32>
    %30 = arith.mulf %25, %29 : vector<8x128xf32>
    %31 = arith.subf %29, %30 : vector<8x128xf32>
    %32 = arith.truncf %31 : vector<8x128xf32> to vector<8x128xbf16>
    %cst_15 = arith.constant dense<0.000000e+00> : vector<8x384xf32>
    %33 = tpu.matmul %32, %12, %cst_15 {dimension_numbers = #tpu.dot_dimension_numbers<[1], [0], [0], [1], [0, 0, 1, 1], [], []>} : vector<8x128xbf16>, vector<128x384xbf16>, vector<8x384xf32> -> vector<8x384xf32>
    %34 = vector.extract_strided_slice %8 {offsets = [8, 0], sizes = [8, 384], strides = [1, 1]} : vector<64x384xf32> to vector<8x384xf32>
    %35 = vector.extract_strided_slice %34 {offsets = [0, 0], sizes = [8, 128], strides = [1, 1]} : vector<8x384xf32> to vector<8x128xf32>
    %36 = vector.extract_strided_slice %33 {offsets = [0, 0], sizes = [8, 128], strides = [1, 1]} : vector<8x384xf32> to vector<8x128xf32>
    %37 = arith.addf %35, %36 : vector<8x128xf32>
    %38 = arith.negf %37 : vector<8x128xf32>
    %39 = math.exp %38 : vector<8x128xf32>
    %cst_16 = arith.constant 1.000000e+00 : f32
    %40 = vector.broadcast %cst_16 : f32 to vector<8x128xf32>
    %41 = arith.addf %40, %39 : vector<8x128xf32>
    %42 = arith.divf %40, %41 : vector<8x128xf32>
    %43 = vector.extract_strided_slice %34 {offsets = [0, 128], sizes = [8, 128], strides = [1, 1]} : vector<8x384xf32> to vector<8x128xf32>
    %44 = vector.extract_strided_slice %33 {offsets = [0, 128], sizes = [8, 128], strides = [1, 1]} : vector<8x384xf32> to vector<8x128xf32>
    %45 = arith.addf %43, %44 : vector<8x128xf32>
    %46 = arith.negf %45 : vector<8x128xf32>
    %47 = math.exp %46 : vector<8x128xf32>
    %cst_17 = arith.constant 1.000000e+00 : f32
    %48 = vector.broadcast %cst_17 : f32 to vector<8x128xf32>
    %49 = arith.addf %48, %47 : vector<8x128xf32>
    %50 = arith.divf %48, %49 : vector<8x128xf32>
    %51 = vector.extract_strided_slice %34 {offsets = [0, 256], sizes = [8, 128], strides = [1, 1]} : vector<8x384xf32> to vector<8x128xf32>
    %52 = vector.extract_strided_slice %33 {offsets = [0, 256], sizes = [8, 128], strides = [1, 1]} : vector<8x384xf32> to vector<8x128xf32>
    %53 = arith.addf %52, %11 : vector<8x128xf32>
    %54 = arith.mulf %42, %53 : vector<8x128xf32>
    %55 = arith.addf %51, %54 : vector<8x128xf32>
    %56 = math.tanh %55 : vector<8x128xf32>
    %57 = arith.subf %31, %56 : vector<8x128xf32>
    %58 = arith.mulf %50, %57 : vector<8x128xf32>
    %59 = arith.addf %56, %58 : vector<8x128xf32>
    %60 = arith.truncf %59 : vector<8x128xf32> to vector<8x128xbf16>
    %cst_18 = arith.constant dense<0.000000e+00> : vector<8x384xf32>
    %61 = tpu.matmul %60, %12, %cst_18 {dimension_numbers = #tpu.dot_dimension_numbers<[1], [0], [0], [1], [0, 0, 1, 1], [], []>} : vector<8x128xbf16>, vector<128x384xbf16>, vector<8x384xf32> -> vector<8x384xf32>
    %62 = vector.extract_strided_slice %8 {offsets = [16, 0], sizes = [8, 384], strides = [1, 1]} : vector<64x384xf32> to vector<8x384xf32>
    %63 = vector.extract_strided_slice %62 {offsets = [0, 0], sizes = [8, 128], strides = [1, 1]} : vector<8x384xf32> to vector<8x128xf32>
    %64 = vector.extract_strided_slice %61 {offsets = [0, 0], sizes = [8, 128], strides = [1, 1]} : vector<8x384xf32> to vector<8x128xf32>
    %65 = arith.addf %63, %64 : vector<8x128xf32>
    %66 = arith.negf %65 : vector<8x128xf32>
    %67 = math.exp %66 : vector<8x128xf32>
    %cst_19 = arith.constant 1.000000e+00 : f32
    %68 = vector.broadcast %cst_19 : f32 to vector<8x128xf32>
    %69 = arith.addf %68, %67 : vector<8x128xf32>
    %70 = arith.divf %68, %69 : vector<8x128xf32>
    %71 = vector.extract_strided_slice %62 {offsets = [0, 128], sizes = [8, 128], strides = [1, 1]} : vector<8x384xf32> to vector<8x128xf32>
    %72 = vector.extract_strided_slice %61 {offsets = [0, 128], sizes = [8, 128], strides = [1, 1]} : vector<8x384xf32> to vector<8x128xf32>
    %73 = arith.addf %71, %72 : vector<8x128xf32>
    %74 = arith.negf %73 : vector<8x128xf32>
    %75 = math.exp %74 : vector<8x128xf32>
    %cst_20 = arith.constant 1.000000e+00 : f32
    %76 = vector.broadcast %cst_20 : f32 to vector<8x128xf32>
    %77 = arith.addf %76, %75 : vector<8x128xf32>
    %78 = arith.divf %76, %77 : vector<8x128xf32>
    %79 = vector.extract_strided_slice %62 {offsets = [0, 256], sizes = [8, 128], strides = [1, 1]} : vector<8x384xf32> to vector<8x128xf32>
    %80 = vector.extract_strided_slice %61 {offsets = [0, 256], sizes = [8, 128], strides = [1, 1]} : vector<8x384xf32> to vector<8x128xf32>
    %81 = arith.addf %80, %11 : vector<8x128xf32>
    %82 = arith.mulf %70, %81 : vector<8x128xf32>
    %83 = arith.addf %79, %82 : vector<8x128xf32>
    %84 = math.tanh %83 : vector<8x128xf32>
    %85 = arith.subf %59, %84 : vector<8x128xf32>
    %86 = arith.mulf %78, %85 : vector<8x128xf32>
    %87 = arith.addf %84, %86 : vector<8x128xf32>
    %88 = arith.truncf %87 : vector<8x128xf32> to vector<8x128xbf16>
    %cst_21 = arith.constant dense<0.000000e+00> : vector<8x384xf32>
    %89 = tpu.matmul %88, %12, %cst_21 {dimension_numbers = #tpu.dot_dimension_numbers<[1], [0], [0], [1], [0, 0, 1, 1], [], []>} : vector<8x128xbf16>, vector<128x384xbf16>, vector<8x384xf32> -> vector<8x384xf32>
    %90 = vector.extract_strided_slice %8 {offsets = [24, 0], sizes = [8, 384], strides = [1, 1]} : vector<64x384xf32> to vector<8x384xf32>
    %91 = vector.extract_strided_slice %90 {offsets = [0, 0], sizes = [8, 128], strides = [1, 1]} : vector<8x384xf32> to vector<8x128xf32>
    %92 = vector.extract_strided_slice %89 {offsets = [0, 0], sizes = [8, 128], strides = [1, 1]} : vector<8x384xf32> to vector<8x128xf32>
    %93 = arith.addf %91, %92 : vector<8x128xf32>
    %94 = arith.negf %93 : vector<8x128xf32>
    %95 = math.exp %94 : vector<8x128xf32>
    %cst_22 = arith.constant 1.000000e+00 : f32
    %96 = vector.broadcast %cst_22 : f32 to vector<8x128xf32>
    %97 = arith.addf %96, %95 : vector<8x128xf32>
    %98 = arith.divf %96, %97 : vector<8x128xf32>
    %99 = vector.extract_strided_slice %90 {offsets = [0, 128], sizes = [8, 128], strides = [1, 1]} : vector<8x384xf32> to vector<8x128xf32>
    %100 = vector.extract_strided_slice %89 {offsets = [0, 128], sizes = [8, 128], strides = [1, 1]} : vector<8x384xf32> to vector<8x128xf32>
    %101 = arith.addf %99, %100 : vector<8x128xf32>
    %102 = arith.negf %101 : vector<8x128xf32>
    %103 = math.exp %102 : vector<8x128xf32>
    %cst_23 = arith.constant 1.000000e+00 : f32
    %104 = vector.broadcast %cst_23 : f32 to vector<8x128xf32>
    %105 = arith.addf %104, %103 : vector<8x128xf32>
    %106 = arith.divf %104, %105 : vector<8x128xf32>
    %107 = vector.extract_strided_slice %90 {offsets = [0, 256], sizes = [8, 128], strides = [1, 1]} : vector<8x384xf32> to vector<8x128xf32>
    %108 = vector.extract_strided_slice %89 {offsets = [0, 256], sizes = [8, 128], strides = [1, 1]} : vector<8x384xf32> to vector<8x128xf32>
    %109 = arith.addf %108, %11 : vector<8x128xf32>
    %110 = arith.mulf %98, %109 : vector<8x128xf32>
    %111 = arith.addf %107, %110 : vector<8x128xf32>
    %112 = math.tanh %111 : vector<8x128xf32>
    %113 = arith.subf %87, %112 : vector<8x128xf32>
    %114 = arith.mulf %106, %113 : vector<8x128xf32>
    %115 = arith.addf %112, %114 : vector<8x128xf32>
    %116 = arith.truncf %115 : vector<8x128xf32> to vector<8x128xbf16>
    %cst_24 = arith.constant dense<0.000000e+00> : vector<8x384xf32>
    %117 = tpu.matmul %116, %12, %cst_24 {dimension_numbers = #tpu.dot_dimension_numbers<[1], [0], [0], [1], [0, 0, 1, 1], [], []>} : vector<8x128xbf16>, vector<128x384xbf16>, vector<8x384xf32> -> vector<8x384xf32>
    %118 = vector.extract_strided_slice %8 {offsets = [32, 0], sizes = [8, 384], strides = [1, 1]} : vector<64x384xf32> to vector<8x384xf32>
    %119 = vector.extract_strided_slice %118 {offsets = [0, 0], sizes = [8, 128], strides = [1, 1]} : vector<8x384xf32> to vector<8x128xf32>
    %120 = vector.extract_strided_slice %117 {offsets = [0, 0], sizes = [8, 128], strides = [1, 1]} : vector<8x384xf32> to vector<8x128xf32>
    %121 = arith.addf %119, %120 : vector<8x128xf32>
    %122 = arith.negf %121 : vector<8x128xf32>
    %123 = math.exp %122 : vector<8x128xf32>
    %cst_25 = arith.constant 1.000000e+00 : f32
    %124 = vector.broadcast %cst_25 : f32 to vector<8x128xf32>
    %125 = arith.addf %124, %123 : vector<8x128xf32>
    %126 = arith.divf %124, %125 : vector<8x128xf32>
    %127 = vector.extract_strided_slice %118 {offsets = [0, 128], sizes = [8, 128], strides = [1, 1]} : vector<8x384xf32> to vector<8x128xf32>
    %128 = vector.extract_strided_slice %117 {offsets = [0, 128], sizes = [8, 128], strides = [1, 1]} : vector<8x384xf32> to vector<8x128xf32>
    %129 = arith.addf %127, %128 : vector<8x128xf32>
    %130 = arith.negf %129 : vector<8x128xf32>
    %131 = math.exp %130 : vector<8x128xf32>
    %cst_26 = arith.constant 1.000000e+00 : f32
    %132 = vector.broadcast %cst_26 : f32 to vector<8x128xf32>
    %133 = arith.addf %132, %131 : vector<8x128xf32>
    %134 = arith.divf %132, %133 : vector<8x128xf32>
    %135 = vector.extract_strided_slice %118 {offsets = [0, 256], sizes = [8, 128], strides = [1, 1]} : vector<8x384xf32> to vector<8x128xf32>
    %136 = vector.extract_strided_slice %117 {offsets = [0, 256], sizes = [8, 128], strides = [1, 1]} : vector<8x384xf32> to vector<8x128xf32>
    %137 = arith.addf %136, %11 : vector<8x128xf32>
    %138 = arith.mulf %126, %137 : vector<8x128xf32>
    %139 = arith.addf %135, %138 : vector<8x128xf32>
    %140 = math.tanh %139 : vector<8x128xf32>
    %141 = arith.subf %115, %140 : vector<8x128xf32>
    %142 = arith.mulf %134, %141 : vector<8x128xf32>
    %143 = arith.addf %140, %142 : vector<8x128xf32>
    %144 = arith.truncf %143 : vector<8x128xf32> to vector<8x128xbf16>
    %cst_27 = arith.constant dense<0.000000e+00> : vector<8x384xf32>
    %145 = tpu.matmul %144, %12, %cst_27 {dimension_numbers = #tpu.dot_dimension_numbers<[1], [0], [0], [1], [0, 0, 1, 1], [], []>} : vector<8x128xbf16>, vector<128x384xbf16>, vector<8x384xf32> -> vector<8x384xf32>
    %146 = vector.extract_strided_slice %8 {offsets = [40, 0], sizes = [8, 384], strides = [1, 1]} : vector<64x384xf32> to vector<8x384xf32>
    %147 = vector.extract_strided_slice %146 {offsets = [0, 0], sizes = [8, 128], strides = [1, 1]} : vector<8x384xf32> to vector<8x128xf32>
    %148 = vector.extract_strided_slice %145 {offsets = [0, 0], sizes = [8, 128], strides = [1, 1]} : vector<8x384xf32> to vector<8x128xf32>
    %149 = arith.addf %147, %148 : vector<8x128xf32>
    %150 = arith.negf %149 : vector<8x128xf32>
    %151 = math.exp %150 : vector<8x128xf32>
    %cst_28 = arith.constant 1.000000e+00 : f32
    %152 = vector.broadcast %cst_28 : f32 to vector<8x128xf32>
    %153 = arith.addf %152, %151 : vector<8x128xf32>
    %154 = arith.divf %152, %153 : vector<8x128xf32>
    %155 = vector.extract_strided_slice %146 {offsets = [0, 128], sizes = [8, 128], strides = [1, 1]} : vector<8x384xf32> to vector<8x128xf32>
    %156 = vector.extract_strided_slice %145 {offsets = [0, 128], sizes = [8, 128], strides = [1, 1]} : vector<8x384xf32> to vector<8x128xf32>
    %157 = arith.addf %155, %156 : vector<8x128xf32>
    %158 = arith.negf %157 : vector<8x128xf32>
    %159 = math.exp %158 : vector<8x128xf32>
    %cst_29 = arith.constant 1.000000e+00 : f32
    %160 = vector.broadcast %cst_29 : f32 to vector<8x128xf32>
    %161 = arith.addf %160, %159 : vector<8x128xf32>
    %162 = arith.divf %160, %161 : vector<8x128xf32>
    %163 = vector.extract_strided_slice %146 {offsets = [0, 256], sizes = [8, 128], strides = [1, 1]} : vector<8x384xf32> to vector<8x128xf32>
    %164 = vector.extract_strided_slice %145 {offsets = [0, 256], sizes = [8, 128], strides = [1, 1]} : vector<8x384xf32> to vector<8x128xf32>
    %165 = arith.addf %164, %11 : vector<8x128xf32>
    %166 = arith.mulf %154, %165 : vector<8x128xf32>
    %167 = arith.addf %163, %166 : vector<8x128xf32>
    %168 = math.tanh %167 : vector<8x128xf32>
    %169 = arith.subf %143, %168 : vector<8x128xf32>
    %170 = arith.mulf %162, %169 : vector<8x128xf32>
    %171 = arith.addf %168, %170 : vector<8x128xf32>
    %172 = arith.truncf %171 : vector<8x128xf32> to vector<8x128xbf16>
    %cst_30 = arith.constant dense<0.000000e+00> : vector<8x384xf32>
    %173 = tpu.matmul %172, %12, %cst_30 {dimension_numbers = #tpu.dot_dimension_numbers<[1], [0], [0], [1], [0, 0, 1, 1], [], []>} : vector<8x128xbf16>, vector<128x384xbf16>, vector<8x384xf32> -> vector<8x384xf32>
    %174 = vector.extract_strided_slice %8 {offsets = [48, 0], sizes = [8, 384], strides = [1, 1]} : vector<64x384xf32> to vector<8x384xf32>
    %175 = vector.extract_strided_slice %174 {offsets = [0, 0], sizes = [8, 128], strides = [1, 1]} : vector<8x384xf32> to vector<8x128xf32>
    %176 = vector.extract_strided_slice %173 {offsets = [0, 0], sizes = [8, 128], strides = [1, 1]} : vector<8x384xf32> to vector<8x128xf32>
    %177 = arith.addf %175, %176 : vector<8x128xf32>
    %178 = arith.negf %177 : vector<8x128xf32>
    %179 = math.exp %178 : vector<8x128xf32>
    %cst_31 = arith.constant 1.000000e+00 : f32
    %180 = vector.broadcast %cst_31 : f32 to vector<8x128xf32>
    %181 = arith.addf %180, %179 : vector<8x128xf32>
    %182 = arith.divf %180, %181 : vector<8x128xf32>
    %183 = vector.extract_strided_slice %174 {offsets = [0, 128], sizes = [8, 128], strides = [1, 1]} : vector<8x384xf32> to vector<8x128xf32>
    %184 = vector.extract_strided_slice %173 {offsets = [0, 128], sizes = [8, 128], strides = [1, 1]} : vector<8x384xf32> to vector<8x128xf32>
    %185 = arith.addf %183, %184 : vector<8x128xf32>
    %186 = arith.negf %185 : vector<8x128xf32>
    %187 = math.exp %186 : vector<8x128xf32>
    %cst_32 = arith.constant 1.000000e+00 : f32
    %188 = vector.broadcast %cst_32 : f32 to vector<8x128xf32>
    %189 = arith.addf %188, %187 : vector<8x128xf32>
    %190 = arith.divf %188, %189 : vector<8x128xf32>
    %191 = vector.extract_strided_slice %174 {offsets = [0, 256], sizes = [8, 128], strides = [1, 1]} : vector<8x384xf32> to vector<8x128xf32>
    %192 = vector.extract_strided_slice %173 {offsets = [0, 256], sizes = [8, 128], strides = [1, 1]} : vector<8x384xf32> to vector<8x128xf32>
    %193 = arith.addf %192, %11 : vector<8x128xf32>
    %194 = arith.mulf %182, %193 : vector<8x128xf32>
    %195 = arith.addf %191, %194 : vector<8x128xf32>
    %196 = math.tanh %195 : vector<8x128xf32>
    %197 = arith.subf %171, %196 : vector<8x128xf32>
    %198 = arith.mulf %190, %197 : vector<8x128xf32>
    %199 = arith.addf %196, %198 : vector<8x128xf32>
    %200 = arith.truncf %199 : vector<8x128xf32> to vector<8x128xbf16>
    %cst_33 = arith.constant dense<0.000000e+00> : vector<8x384xf32>
    %201 = tpu.matmul %200, %12, %cst_33 {dimension_numbers = #tpu.dot_dimension_numbers<[1], [0], [0], [1], [0, 0, 1, 1], [], []>} : vector<8x128xbf16>, vector<128x384xbf16>, vector<8x384xf32> -> vector<8x384xf32>
    %202 = vector.extract_strided_slice %8 {offsets = [56, 0], sizes = [8, 384], strides = [1, 1]} : vector<64x384xf32> to vector<8x384xf32>
    %203 = vector.extract_strided_slice %202 {offsets = [0, 0], sizes = [8, 128], strides = [1, 1]} : vector<8x384xf32> to vector<8x128xf32>
    %204 = vector.extract_strided_slice %201 {offsets = [0, 0], sizes = [8, 128], strides = [1, 1]} : vector<8x384xf32> to vector<8x128xf32>
    %205 = arith.addf %203, %204 : vector<8x128xf32>
    %206 = arith.negf %205 : vector<8x128xf32>
    %207 = math.exp %206 : vector<8x128xf32>
    %cst_34 = arith.constant 1.000000e+00 : f32
    %208 = vector.broadcast %cst_34 : f32 to vector<8x128xf32>
    %209 = arith.addf %208, %207 : vector<8x128xf32>
    %210 = arith.divf %208, %209 : vector<8x128xf32>
    %211 = vector.extract_strided_slice %202 {offsets = [0, 128], sizes = [8, 128], strides = [1, 1]} : vector<8x384xf32> to vector<8x128xf32>
    %212 = vector.extract_strided_slice %201 {offsets = [0, 128], sizes = [8, 128], strides = [1, 1]} : vector<8x384xf32> to vector<8x128xf32>
    %213 = arith.addf %211, %212 : vector<8x128xf32>
    %214 = arith.negf %213 : vector<8x128xf32>
    %215 = math.exp %214 : vector<8x128xf32>
    %cst_35 = arith.constant 1.000000e+00 : f32
    %216 = vector.broadcast %cst_35 : f32 to vector<8x128xf32>
    %217 = arith.addf %216, %215 : vector<8x128xf32>
    %218 = arith.divf %216, %217 : vector<8x128xf32>
    %219 = vector.extract_strided_slice %202 {offsets = [0, 256], sizes = [8, 128], strides = [1, 1]} : vector<8x384xf32> to vector<8x128xf32>
    %220 = vector.extract_strided_slice %201 {offsets = [0, 256], sizes = [8, 128], strides = [1, 1]} : vector<8x384xf32> to vector<8x128xf32>
    %221 = arith.addf %220, %11 : vector<8x128xf32>
    %222 = arith.mulf %210, %221 : vector<8x128xf32>
    %223 = arith.addf %219, %222 : vector<8x128xf32>
    %224 = math.tanh %223 : vector<8x128xf32>
    %225 = arith.subf %199, %224 : vector<8x128xf32>
    %226 = arith.mulf %218, %225 : vector<8x128xf32>
    %227 = arith.addf %224, %226 : vector<8x128xf32>
    %228 = vector.extract_strided_slice %227 {offsets = [0, 0], sizes = [2, 128], strides = [1, 1]} : vector<8x128xf32> to vector<2x128xf32>
    %229 = vector.shape_cast %228 : vector<2x128xf32> to vector<1x2x128xf32>
    %c0_36 = arith.constant 0 : index
    %c0_37 = arith.constant 0 : index
    %c0_38 = arith.constant 0 : index
    %230 = vector.load %arg10[%c0_36, %c0_37, %c0_38] : memref<1x2x128xf32, #tpu.memory_space<vmem>>, vector<1x2x128xf32>
    tpu.vector_store %arg10[%c0_36, %c0_37, %c0_38], %229 {strides = array<i32>} : memref<1x2x128xf32, #tpu.memory_space<vmem>>, vector<1x2x128xf32>,
    %231 = tpu.concatenate %31, %59, %87, %115, %143, %171, %199, %227 in 0 : vector<8x128xf32>, vector<8x128xf32>, vector<8x128xf32>, vector<8x128xf32>, vector<8x128xf32>, vector<8x128xf32>, vector<8x128xf32>, vector<8x128xf32> -> vector<64x128xf32>
    %c0_39 = arith.constant 0 : index
    %c0_40 = arith.constant 0 : index
    %232 = vector.load %arg2[%c0_39, %c0_40] : memref<16x64xf32, #tpu.memory_space<vmem>>, vector<16x64xf32>
    %cst_41 = arith.constant dense<0.000000e+00> : vector<16x128xf32>
    %233 = tpu.matmul %232, %231, %cst_41 {dimension_numbers = #tpu.dot_dimension_numbers<[1], [0], [0], [1], [0, 0, 1, 1], [], []>} : vector<16x64xf32>, vector<64x128xf32>, vector<16x128xf32> -> vector<16x128xf32>
    %c0_42 = arith.constant 0 : index
    %c0_43 = arith.constant 0 : index
    %234 = vector.load %arg7[%c0_42, %c0_43] : memref<128x51xf32, #tpu.memory_space<vmem>>, vector<128x51xf32>
    %cst_44 = arith.constant dense<0.000000e+00> : vector<16x51xf32>
    %235 = tpu.matmul %233, %234, %cst_44 {dimension_numbers = #tpu.dot_dimension_numbers<[1], [0], [0], [1], [0, 0, 1, 1], [], []>} : vector<16x128xf32>, vector<128x51xf32>, vector<16x51xf32> -> vector<16x51xf32>
    %c0_45 = arith.constant 0 : index
    %c0_46 = arith.constant 0 : index
    %236 = vector.load %arg8[%c0_45, %c0_46] : memref<1x51xf32, #tpu.memory_space<vmem>>, vector<1x51xf32>
    %237 = vector.broadcast %236 : vector<1x51xf32> to vector<16x51xf32>
    %238 = arith.addf %235, %237 : vector<16x51xf32>
    %239 = vector.shape_cast %238 : vector<16x51xf32> to vector<2x8x51xf32>
    %c0_47 = arith.constant 0 : index
    %c0_48 = arith.constant 0 : index
    %c0_49 = arith.constant 0 : index
    %240 = vector.load %arg9[%c0_47, %c0_48, %c0_49] : memref<2x8x51xf32, #tpu.memory_space<vmem>>, vector<2x8x51xf32>
    tpu.vector_store %arg9[%c0_47, %c0_48, %c0_49], %239 {strides = array<i32>} : memref<2x8x51xf32, #tpu.memory_space<vmem>>, vector<2x8x51xf32>,
    return
  }
}

</mosaic_0001>

<llo_original>
// kernel: pose_lifter_forward.1
$region0: #{pose_lifter_forward.1}
  #allocation0 [shape = 'u32[]', space=smem, size = 0x4, offset = 0x4, fixed_abs, tag = 'smem constant byte address 0x4 - core index']
  #allocation1 [shape = 'u32[144,128]{1,0:T(1,128)}', space=vmem, size = 0x12000, scoped, tag = 'internal scratch']
  %s0 = inlined_call_operand.hbm [shape: f32[2,8,34], index: 0, kind: input, shape index: {}]
  %s1 = inlined_call_operand.hbm [shape: f32[64,16], index: 1, kind: input, shape index: {}]
  %s2 = inlined_call_operand.vmem [shape: f32[16,64], index: 2, kind: input, shape index: {}]
  %s3 = inlined_call_operand.hbm [shape: f32[34,384], index: 3, kind: input, shape index: {}]
  %s4 = inlined_call_operand.hbm [shape: f32[1,384], index: 4, kind: input, shape index: {}]
  %s5 = inlined_call_operand.vmem [shape: bf16[128,384], index: 5, kind: input, shape index: {}]
  %s6 = inlined_call_operand.vmem [shape: f32[1,128], index: 6, kind: input, shape index: {}]
  %s7 = inlined_call_operand.vmem [shape: f32[128,51], index: 7, kind: input, shape index: {}]
  %s8 = inlined_call_operand.vmem [shape: f32[1,51], index: 8, kind: input, shape index: {}]
  %s9 = inlined_call_operand.hbm [shape: f32[2,8,51], index: 9, kind: output, shape index: {0}]
  %s10 = inlined_call_operand.hbm [shape: f32[1,2,128], index: 10, kind: output, shape index: {1}]
  %11 = xla_tuple %s9, %s10
  %s12 = sld [smem:[#allocation0]]
  $region70: #{pose_lifter_forward.1} parent=0
    _
  %s14 = ssub.s32 1, %s12
  %s15 = scalar_select 0, %s14, %s12
  $region1: #{pose_lifter_forward.1} parent=0
    #allocation2 [shape = 'u8[8192]{0}', space=vmem, size = 0x2000, scoped, tag = 'input window, operand 0, single buffered']
    #allocation3 [shape = 's32[1]{0}', space=sflag, size = 0x4, scoped, tag = 'scoped memory for pose_lifter_forward.1']
    #allocation4 [shape = 's32[1]{0}', space=sflag, size = 0x4, scoped, tag = 'scoped memory for pose_lifter_forward.1']
    #allocation5 [shape = 'u8[32768]{0}', space=vmem, size = 0x8000, scoped, tag = 'input window, operand 1, single buffered']
    #allocation6 [shape = 's32[1]{0}', space=sflag, size = 0x4, scoped, tag = 'scoped memory for pose_lifter_forward.1']
    #allocation7 [shape = 'u8[61440]{0}', space=vmem, size = 0xf000, scoped, tag = 'input window, operand 3, single buffered']
    #allocation8 [shape = 'u8[1536]{0}', space=vmem, size = 0x800, scoped, tag = 'input window, operand 4, single buffered']
    #allocation9 [shape = 's32[1]{0}', space=sflag, size = 0x4, scoped, tag = 'scoped memory for pose_lifter_forward.1']
    #allocation10 [shape = 'u8[8192]{0}', space=vmem, size = 0x2000, scoped, tag = 'output window, operand 0, single buffered']
    #allocation11 [shape = 'u8[1024]{0}', space=vmem, size = 0x400, scoped, tag = 'output window, operand 1, single buffered']
    #allocation12 [shape = 's32[1]{0}', space=sflag, size = 0x4, scoped, tag = 'scoped memory for pose_lifter_forward.1']
    %16 = vsyncpa [#allocation3], 0
    %17 = vsyncpa [#allocation6], 0
    %18 = vsyncpa [#allocation9], 0
    %19 = vsyncpa [#allocation4], 0
    %20 = vsyncpa [#allocation12], 0
    // Predicated region
    $region2: #{pose_lifter_forward.1} parent=1 // pred_check
      _
    $region3: #{pose_lifter_forward.1} parent=1 // pred_check_branch
      %22 = sbr.rel (0) target = $region5
    $region4: #{pose_lifter_forward.1} parent=1 // pred_region
      %s24 = ssub.s32 256, 256
      %25 = vsyncadd [#allocation3], %s24
      %s26 = sshll.u32 [#allocation2], 4
      %s27 = int_to_ptr.vmem [resolvable:$true] %s26
      %32 = dma.hbm_to_vmem [thread:$0]  %s0, 256, %s27, [#allocation3], 128, 128, 8
    $region5: #{pose_lifter_forward.1} parent=1 // pred_fallthru
      _
    // Predicated region
    $region6: #{pose_lifter_forward.1} parent=1 // pred_check
      _
    $region7: #{pose_lifter_forward.1} parent=1 // pred_check_branch
      %34 = sbr.rel (0) target = $region9
    $region8: #{pose_lifter_forward.1} parent=1 // pred_region
      %s36 = ssub.s32 1024, 1024
      %37 = vsyncadd [#allocation6], %s36
      %s38 = sshll.u32 [#allocation5], 4
      %s39 = int_to_ptr.vmem [resolvable:$true] %s38
      %44 = dma.hbm_to_vmem [thread:$0]  %s1, 1024, %s39, [#allocation6], 128, 128, 8
    $region9: #{pose_lifter_forward.1} parent=1 // pred_fallthru
      _
    // Predicated region
    $region10: #{pose_lifter_forward.1} parent=1 // pred_check
      _
    $region11: #{pose_lifter_forward.1} parent=1 // pred_check_branch
      %46 = sbr.rel (0) target = $region13
    $region12: #{pose_lifter_forward.1} parent=1 // pred_region
      _
    $region13: #{pose_lifter_forward.1} parent=1 // pred_fallthru
      _
    // Predicated region
    $region14: #{pose_lifter_forward.1} parent=1 // pred_check
      _
    $region15: #{pose_lifter_forward.1} parent=1 // pred_check_branch
      %48 = sbr.rel (0) target = $region17
    $region16: #{pose_lifter_forward.1} parent=1 // pred_region
      %s50 = ssub.s32 1920, 1920
      %51 = vsyncadd [#allocation6], %s50
      %s52 = sshll.u32 [#allocation7], 4
      %s53 = int_to_ptr.vmem [resolvable:$true] %s52
      %58 = dma.hbm_to_vmem [thread:$0]  %s3, 1920, %s53, [#allocation6], 384, 384, 24
    $region17: #{pose_lifter_forward.1} parent=1 // pred_fallthru
      _
    // Predicated region
    $region18: #{pose_lifter_forward.1} parent=1 // pred_check
      _
    $region19: #{pose_lifter_forward.1} parent=1 // pred_check_branch
      %60 = sbr.rel (0) target = $region21
    $region20: #{pose_lifter_forward.1} parent=1 // pred_region
      %s62 = ssub.s32 48, 48
      %63 = vsyncadd [#allocation9], %s62
      %s65 = sshll.u32 [#allocation8], 4
      %s66 = int_to_ptr.vmem [resolvable:$true] %s65
      %68 = dma.hbm_to_vmem [thread:$0]  %s4, 48, %s66, [#allocation9]
    $region21: #{pose_lifter_forward.1} parent=1 // pred_fallthru
      _
    // Predicated region
    $region22: #{pose_lifter_forward.1} parent=1 // pred_check
      _
    $region23: #{pose_lifter_forward.1} parent=1 // pred_check_branch
      %70 = sbr.rel (0) target = $region25
    $region24: #{pose_lifter_forward.1} parent=1 // pred_region
      _
    $region25: #{pose_lifter_forward.1} parent=1 // pred_fallthru
      _
    // Predicated region
    $region26: #{pose_lifter_forward.1} parent=1 // pred_check
      _
    $region27: #{pose_lifter_forward.1} parent=1 // pred_check_branch
      %72 = sbr.rel (0) target = $region29
    $region28: #{pose_lifter_forward.1} parent=1 // pred_region
      _
    $region29: #{pose_lifter_forward.1} parent=1 // pred_fallthru
      _
    // Predicated region
    $region30: #{pose_lifter_forward.1} parent=1 // pred_check
      _
    $region31: #{pose_lifter_forward.1} parent=1 // pred_check_branch
      %74 = sbr.rel (0) target = $region33
    $region32: #{pose_lifter_forward.1} parent=1 // pred_region
      _
    $region33: #{pose_lifter_forward.1} parent=1 // pred_fallthru
      _
    // Predicated region
    $region34: #{pose_lifter_forward.1} parent=1 // pred_check
      _
    $region35: #{pose_lifter_forward.1} parent=1 // pred_check_branch
      %76 = sbr.rel (0) target = $region37
    $region36: #{pose_lifter_forward.1} parent=1 // pred_region
      _
    $region37: #{pose_lifter_forward.1} parent=1 // pred_fallthru
      _
    // Predicated region
    $region38: #{pose_lifter_forward.1} parent=1 // pred_check
      _
    $region39: #{pose_lifter_forward.1} parent=1 // pred_check_branch
      %78 = sbr.rel (0) target = $region41
    $region40: #{pose_lifter_forward.1} parent=1 // pred_region
      %79 = dma.done [#allocation3], 256
    $region41: #{pose_lifter_forward.1} parent=1 // pred_fallthru
      _
    // Predicated region
    $region42: #{pose_lifter_forward.1} parent=1 // pred_check
      _
    $region43: #{pose_lifter_forward.1} parent=1 // pred_check_branch
      %81 = sbr.rel (0) target = $region45
    $region44: #{pose_lifter_forward.1} parent=1 // pred_region
      %82 = dma.done [#allocation6], 1024
    $region45: #{pose_lifter_forward.1} parent=1 // pred_fallthru
      _
    // Predicated region
    $region46: #{pose_lifter_forward.1} parent=1 // pred_check
      _
    $region47: #{pose_lifter_forward.1} parent=1 // pred_check_branch
      %84 = sbr.rel (0) target = $region49
    $region48: #{pose_lifter_forward.1} parent=1 // pred_region
      %85 = dma.done [#allocation6], 1920
    $region49: #{pose_lifter_forward.1} parent=1 // pred_fallthru
      _
    // Predicated region
    $region50: #{pose_lifter_forward.1} parent=1 // pred_check
      _
    $region51: #{pose_lifter_forward.1} parent=1 // pred_check_branch
      %87 = sbr.rel (0) target = $region53
    $region52: #{pose_lifter_forward.1} parent=1 // pred_region
      %88 = dma.done [#allocation9], 48
    $region53: #{pose_lifter_forward.1} parent=1 // pred_fallthru
      _
    %v90 = vld [vmem:[#allocation2] sm:$0xff]
    %v91 = vld [vmem:[#allocation2 + $0x8] sm:$0xff]
    %v92 = vld [vmem:[#allocation7] sm:$0xff]
    %v93 = vld [vmem:[#allocation7 + $0x8] sm:$0xff]
    %v94 = vld [vmem:[#allocation7 + $0x10] sm:$0xff]
    %v95 = vld [vmem:[#allocation7 + $0x18] sm:$0xff]
    %v96 = vld [vmem:[#allocation7 + $0x20] sm:$0xff]
    %v97 = vld [vmem:[#allocation7 + $0x28] sm:$0xff]
    %v98 = vld [vmem:[#allocation7 + $0x30] sm:$0xff]
    %v99 = vld [vmem:[#allocation7 + $0x38] sm:$0xff]
    %v100 = vld [vmem:[#allocation7 + $0x40] sm:$0xff]
    %v101 = vld [vmem:[#allocation7 + $0x48] sm:$0xff]
    %v102 = vld [vmem:[#allocation7 + $0x50] sm:$0xff]
    %v103 = vld [vmem:[#allocation7 + $0x58] sm:$0xff]
    %v104 = vld [vmem:[#allocation7 + $0x60] sm:$0x3]
    %v105 = vld [vmem:[#allocation7 + $0x68] sm:$0x3]
    %v106 = vld [vmem:[#allocation7 + $0x70] sm:$0x3]
    %v107 = vld [vmem:[#allocation8] sm:$0x7]
    %v109 = vlaneseq
    %v110 = vshrl.u32 %v109, 7
    %v111 = vsub.s32 0, %v110
    %v112 = vrot.slane %v107, %v111
    %v113 = vlaneseq
    %v114 = vshrl.u32 %v113, 7
    %v115 = vsub.s32 1, %v114
    %v116 = vrot.slane %v107, %v115
    %v117 = vlaneseq
    %v118 = vshrl.u32 %v117, 7
    %v119 = vsub.s32 2, %v118
    %v120 = vrot.slane %v107, %v119
    %vm124 = vcmask 277504
    %v126 = vsel %vm124, %v90, 0
    %v129 = vsel %vm124, %v91, 0
    %vm131 = vcmask 1041408
    %v133 = vsel %vm131, %v104, 0
    %v136 = vsel %vm131, %v105, 0
    %v139 = vsel %vm131, %v106, 0
    %141 = vmatprep.subr.mxu0 %v93
    %142 = vmatpush1.msra.mxu0 %v92
    %143 = vmatprep.subr.mxu0 %v96
    %144 = vmatpush1.msra.mxu0 %v95
    %145 = vmatprep.subr.mxu0 %v99
    %146 = vmatpush1.msra.mxu0 %v98
    %147 = vmatprep.subr.mxu0 %v102
    %148 = vmatpush1.msra.mxu0 %v101
    %149 = vmatprep.subr.mxu0 %v136
    %150 = vmatpush1.msra.mxu0 %v133
    %151 = vmatprep.subr.mxu0 0.0
    %152 = vmatpush1.msra.mxu0 0.0
    %153 = vmatprep.subr.mxu0 0.0
    %154 = vmatpush1.msra.mxu0 0.0
    %155 = vmatprep.subr.mxu0 0.0
    %156 = vmatpush1.msra.mxu0 0.0
    %157 = vmatprep.subr.mxu0 0.0
    %158 = vmatpush1.msra.mxu0 0.0
    %159 = vmatprep.subr.mxu0 0.0
    %160 = vmatpush1.msra.mxu0 0.0
    %161 = vmatprep.subr.mxu0 0.0
    %162 = vmatpush1.msra.mxu0 0.0
    %163 = vmatprep.subr.mxu0 0.0
    %164 = vmatpush1.msra.mxu0 0.0
    %165 = vmatprep.subr.mxu0 0.0
    %166 = vmatpush1.msra.mxu0 0.0
    %167 = vmatprep.subr.mxu0 0.0
    %168 = vmatpush1.msra.mxu0 0.0
    %169 = vmatprep.subr.mxu0 0.0
    %170 = vmatpush1.msra.mxu0 0.0
    %171 = vmatprep.subr.mxu0 0.0
    %172 = vmatpush1.msra.mxu0 0.0
    %173 = vmatprep.subr.mxu0 0.0
    %174 = vmatpush1.msra.mxu0 0.0
    %175 = vmatprep.subr.mxu0 0.0
    %176 = vmatpush1.msra.mxu0 0.0
    %177 = vmatprep.subr.mxu0 0.0
    %178 = vmatpush1.msra.mxu0 0.0
    %179 = vmatprep.subr.mxu0 0.0
    %180 = vmatpush1.msra.mxu0 0.0
    %181 = vmatprep.subr.mxu0 0.0
    %182 = vmatpush1.msra.mxu0 0.0
    %183 = vmatprep.subr.mxu0 0.0
    %184 = vmatpush1.msra.mxu0 0.0
    %185 = vmatprep.subr.mxu0 0.0
    %186 = vmatpush1.msra.mxu0 0.0
    %187 = vmatprep.subr.mxu0 0.0
    %188 = vmatpush1.msra.mxu0 0.0
    %189 = vmatprep.subr.mxu0 0.0
    %190 = vmatpush1.msra.mxu0 0.0
    %191 = vmatprep.subr.mxu0 0.0
    %192 = vmatpush1.msra.mxu0 0.0
    %193 = vmatprep.subr.mxu0 0.0
    %194 = vmatpush1.msra.mxu0 0.0
    %195 = vmatprep.subr.mxu0 0.0
    %196 = vmatpush1.msra.mxu0 0.0
    %197 = vmatprep.subr.mxu0 0.0
    %198 = vmatpush1.msra.mxu0 0.0
    %199 = vmatprep.subr.mxu0 0.0
    %200 = vmatpush1.msra.mxu0 0.0
    %201 = vmatprep.subr.mxu0 0.0
    %202 = vmatpush1.msra.mxu0 0.0
    %203 = vmatprep.subr.mxu0 0.0
    %204 = vmatpush1.msra.mxu0 0.0
    %205 = vmatprep.mubr.f32.mxu0 0.0
    %206 = vmatmul.mubr.f32.gmra.mrb[0].mxu0 %v126
    %v207 = vpop.f32.mrb[0].mxu0
    %v208 = vadd.f32 %v112, %v207
    %v209 = vpop.f32.mrb[0].mxu0
    %v210 = vadd.f32 %v116, %v209
    %211 = vmatprep.mubr.f32.mxu0 0.0
    %212 = vmatmul.mubr.f32.gmra.mrb[0].mxu0 %v129
    %v213 = vpop.f32.mrb[0].mxu0
    %v214 = vadd.f32 %v112, %v213
    %v215 = vpop.f32.mrb[0].mxu0
    %v216 = vadd.f32 %v116, %v215
    %217 = vdwg.mxu0
    %218 = vmatprep.subr.mxu0 0.0
    %219 = vmatpush1.msra.mxu0 %v94
    %220 = vmatprep.subr.mxu0 0.0
    %221 = vmatpush1.msra.mxu0 %v97
    %222 = vmatprep.subr.mxu0 0.0
    %223 = vmatpush1.msra.mxu0 %v100
    %224 = vmatprep.subr.mxu0 0.0
    %225 = vmatpush1.msra.mxu0 %v103
    %226 = vmatprep.subr.mxu0 0.0
    %227 = vmatpush1.msra.mxu0 %v139
    %228 = vmatprep.subr.mxu0 0.0
    %229 = vmatpush1.msra.mxu0 0.0
    %230 = vmatprep.subr.mxu0 0.0
    %231 = vmatpush1.msra.mxu0 0.0
    %232 = vmatprep.subr.mxu0 0.0
    %233 = vmatpush1.msra.mxu0 0.0
    %234 = vmatprep.subr.mxu0 0.0
    %235 = vmatpush1.msra.mxu0 0.0
    %236 = vmatprep.subr.mxu0 0.0
    %237 = vmatpush1.msra.mxu0 0.0
    %238 = vmatprep.subr.mxu0 0.0
    %239 = vmatpush1.msra.mxu0 0.0
    %240 = vmatprep.subr.mxu0 0.0
    %241 = vmatpush1.msra.mxu0 0.0
    %242 = vmatprep.subr.mxu0 0.0
    %243 = vmatpush1.msra.mxu0 0.0
    %244 = vmatprep.subr.mxu0 0.0
    %245 = vmatpush1.msra.mxu0 0.0
    %246 = vmatprep.subr.mxu0 0.0
    %247 = vmatpush1.msra.mxu0 0.0
    %248 = vmatprep.subr.mxu0 0.0
    %249 = vmatpush1.msra.mxu0 0.0
    %250 = vmatprep.subr.mxu0 0.0
    %251 = vmatpush1.msra.mxu0 0.0
    %252 = vmatprep.subr.mxu0 0.0
    %253 = vmatpush1.msra.mxu0 0.0
    %254 = vmatprep.subr.mxu0 0.0
    %255 = vmatpush1.msra.mxu0 0.0
    %256 = vmatprep.subr.mxu0 0.0
    %257 = vmatpush1.msra.mxu0 0.0
    %258 = vmatprep.subr.mxu0 0.0
    %259 = vmatpush1.msra.mxu0 0.0
    %260 = vmatprep.subr.mxu0 0.0
    %261 = vmatpush1.msra.mxu0 0.0
    %262 = vmatprep.subr.mxu0 0.0
    %263 = vmatpush1.msra.mxu0 0.0
    %264 = vmatprep.subr.mxu0 0.0
    %265 = vmatpush1.msra.mxu0 0.0
    %266 = vmatprep.subr.mxu0 0.0
    %267 = vmatpush1.msra.mxu0 0.0
    %268 = vmatprep.subr.mxu0 0.0
    %269 = vmatpush1.msra.mxu0 0.0
    %270 = vmatprep.subr.mxu0 0.0
    %271 = vmatpush1.msra.mxu0 0.0
    %272 = vmatprep.subr.mxu0 0.0
    %273 = vmatpush1.msra.mxu0 0.0
    %274 = vmatprep.subr.mxu0 0.0
    %275 = vmatpush1.msra.mxu0 0.0
    %276 = vmatprep.subr.mxu0 0.0
    %277 = vmatpush1.msra.mxu0 0.0
    %278 = vmatprep.subr.mxu0 0.0
    %279 = vmatpush1.msra.mxu0 0.0
    %280 = vmatprep.subr.mxu0 0.0
    %281 = vmatpush1.msra.mxu0 0.0
    %282 = vmatprep.mubr.f32.mxu0 0.0
    %283 = vmatmul.mubr.f32.gmra.mrb[0].mxu0 %v126
    %v284 = vpop.f32.mrb[0].mxu0
    %v285 = vadd.f32 %v120, %v284
    %v286 = vpop.f32.mrb[0].mxu0
    %287 = vmatprep.mubr.f32.mxu0 0.0
    %288 = vmatmul.mubr.f32.gmra.mrb[0].mxu0 %v129
    %v289 = vpop.f32.mrb[0].mxu0
    %v290 = vadd.f32 %v120, %v289
    %v291 = vpop.f32.mrb[0].mxu0
    %292 = vdwg.mxu0
    %v293 = vld [vmem:[#allocation5] sm:$0xff]
    %v294 = vld [vmem:[#allocation5 + $0x8] sm:$0xff]
    %v295 = vld [vmem:[#allocation5 + $0x10] sm:$0xff]
    %v296 = vld [vmem:[#allocation5 + $0x18] sm:$0xff]
    %v297 = vld [vmem:[#allocation5 + $0x20] sm:$0xff]
    %v298 = vld [vmem:[#allocation5 + $0x28] sm:$0xff]
    %v299 = vld [vmem:[#allocation5 + $0x30] sm:$0xff]
    %v300 = vld [vmem:[#allocation5 + $0x38] sm:$0xff]
    %vm301 = vcmask 130048
    %v303 = vsel %vm301, %v293, 0
    %v306 = vsel %vm301, %v294, 0
    %v309 = vsel %vm301, %v295, 0
    %v312 = vsel %vm301, %v296, 0
    %v315 = vsel %vm301, %v297, 0
    %v318 = vsel %vm301, %v298, 0
    %v321 = vsel %vm301, %v299, 0
    %v324 = vsel %vm301, %v300, 0
    %326 = vmatprep.subr.mxu0 %v210
    %327 = vmatpush1.msra.mxu0 %v208
    %328 = vmatprep.subr.mxu0 %v216
    %329 = vmatpush1.msra.mxu0 %v214
    %330 = vmatprep.subr.mxu0 0.0
    %331 = vmatpush1.msra.mxu0 0.0
    %332 = vmatprep.subr.mxu0 0.0
    %333 = vmatpush1.msra.mxu0 0.0
    %334 = vmatprep.subr.mxu0 0.0
    %335 = vmatpush1.msra.mxu0 0.0
    %336 = vmatprep.subr.mxu0 0.0
    %337 = vmatpush1.msra.mxu0 0.0
    %338 = vmatprep.subr.mxu0 0.0
    %339 = vmatpush1.msra.mxu0 0.0
    %340 = vmatprep.subr.mxu0 0.0
    %341 = vmatpush1.msra.mxu0 0.0
    %342 = vmatprep.subr.mxu0 0.0
    %343 = vmatpush1.msra.mxu0 0.0
    %344 = vmatprep.subr.mxu0 0.0
    %345 = vmatpush1.msra.mxu0 0.0
    %346 = vmatprep.subr.mxu0 0.0
    %347 = vmatpush1.msra.mxu0 0.0
    %348 = vmatprep.subr.mxu0 0.0
    %349 = vmatpush1.msra.mxu0 0.0
    %350 = vmatprep.subr.mxu0 0.0
    %351 = vmatpush1.msra.mxu0 0.0
    %352 = vmatprep.subr.mxu0 0.0
    %353 = vmatpush1.msra.mxu0 0.0
    %354 = vmatprep.subr.mxu0 0.0
    %355 = vmatpush1.msra.mxu0 0.0
    %356 = vmatprep.subr.mxu0 0.0
    %357 = vmatpush1.msra.mxu0 0.0
    %358 = vmatprep.subr.mxu0 0.0
    %359 = vmatpush1.msra.mxu0 0.0
    %360 = vmatprep.subr.mxu0 0.0
    %361 = vmatpush1.msra.mxu0 0.0
    %362 = vmatprep.subr.mxu0 0.0
    %363 = vmatpush1.msra.mxu0 0.0
    %364 = vmatprep.subr.mxu0 0.0
    %365 = vmatpush1.msra.mxu0 0.0
    %366 = vmatprep.subr.mxu0 0.0
    %367 = vmatpush1.msra.mxu0 0.0
    %368 = vmatprep.subr.mxu0 0.0
    %369 = vmatpush1.msra.mxu0 0.0
    %370 = vmatprep.subr.mxu0 0.0
    %371 = vmatpush1.msra.mxu0 0.0
    %372 = vmatprep.subr.mxu0 0.0
    %373 = vmatpush1.msra.mxu0 0.0
    %374 = vmatprep.subr.mxu0 0.0
    %375 = vmatpush1.msra.mxu0 0.0
    %376 = vmatprep.subr.mxu0 0.0
    %377 = vmatpush1.msra.mxu0 0.0
    %378 = vmatprep.subr.mxu0 0.0
    %379 = vmatpush1.msra.mxu0 0.0
    %380 = vmatprep.subr.mxu0 0.0
    %381 = vmatpush1.msra.mxu0 0.0
    %382 = vmatprep.subr.mxu0 0.0
    %383 = vmatpush1.msra.mxu0 0.0
    %384 = vmatprep.subr.mxu0 0.0
    %385 = vmatpush1.msra.mxu0 0.0
    %386 = vmatprep.subr.mxu0 0.0
    %387 = vmatpush1.msra.mxu0 0.0
    %388 = vmatprep.subr.mxu0 0.0
    %389 = vmatpush1.msra.mxu0 0.0
    %390 = vmatprep.mubr.f32.mxu0 0.0
    %391 = vmatmul.mubr.f32.gmra.mrb[0].mxu0 %v303
    %v392 = vpop.f32.mrb[0].mxu0
    %v393 = vadd.f32 0.0, %v392
    %v394 = vpop.f32.mrb[0].mxu0
    %v395 = vadd.f32 0.0, %v394
    %396 = vmatprep.mubr.f32.mxu0 0.0
    %397 = vmatmul.mubr.f32.gmra.mrb[0].mxu0 %v306
    %v398 = vpop.f32.mrb[0].mxu0
    %v399 = vadd.f32 0.0, %v398
    %v400 = vpop.f32.mrb[0].mxu0
    %v401 = vadd.f32 0.0, %v400
    %402 = vmatprep.mubr.f32.mxu0 0.0
    %403 = vmatmul.mubr.f32.gmra.mrb[0].mxu0 %v309
    %v404 = vpop.f32.mrb[0].mxu0
    %v405 = vadd.f32 0.0, %v404
    %v406 = vpop.f32.mrb[0].mxu0
    %v407 = vadd.f32 0.0, %v406
    %408 = vmatprep.mubr.f32.mxu0 0.0
    %409 = vmatmul.mubr.f32.gmra.mrb[0].mxu0 %v312
    %v410 = vpop.f32.mrb[0].mxu0
    %v411 = vadd.f32 0.0, %v410
    %v412 = vpop.f32.mrb[0].mxu0
    %v413 = vadd.f32 0.0, %v412
    %414 = vmatprep.mubr.f32.mxu0 0.0
    %415 = vmatmul.mubr.f32.gmra.mrb[0].mxu0 %v315
    %v416 = vpop.f32.mrb[0].mxu0
    %v417 = vadd.f32 0.0, %v416
    %v418 = vpop.f32.mrb[0].mxu0
    %v419 = vadd.f32 0.0, %v418
    %420 = vmatprep.mubr.f32.mxu0 0.0
    %421 = vmatmul.mubr.f32.gmra.mrb[0].mxu0 %v318
    %v422 = vpop.f32.mrb[0].mxu0
    %v423 = vadd.f32 0.0, %v422
    %v424 = vpop.f32.mrb[0].mxu0
    %v425 = vadd.f32 0.0, %v424
    %426 = vmatprep.mubr.f32.mxu0 0.0
    %427 = vmatmul.mubr.f32.gmra.mrb[0].mxu0 %v321
    %v428 = vpop.f32.mrb[0].mxu0
    %v429 = vadd.f32 0.0, %v428
    %v430 = vpop.f32.mrb[0].mxu0
    %v431 = vadd.f32 0.0, %v430
    %432 = vmatprep.mubr.f32.mxu0 0.0
    %433 = vmatmul.mubr.f32.gmra.mrb[0].mxu0 %v324
    %v434 = vpop.f32.mrb[0].mxu0
    %v435 = vadd.f32 0.0, %v434
    %v436 = vpop.f32.mrb[0].mxu0
    %v437 = vadd.f32 0.0, %v436
    %438 = vdwg.mxu0
    %439 = vmatprep.subr.mxu0 0.0
    %440 = vmatpush1.msra.mxu0 %v285
    %441 = vmatprep.subr.mxu0 0.0
    %442 = vmatpush1.msra.mxu0 %v290
    %443 = vmatprep.subr.mxu0 0.0
    %444 = vmatpush1.msra.mxu0 0.0
    %445 = vmatprep.subr.mxu0 0.0
    %446 = vmatpush1.msra.mxu0 0.0
    %447 = vmatprep.subr.mxu0 0.0
    %448 = vmatpush1.msra.mxu0 0.0
    %449 = vmatprep.subr.mxu0 0.0
    %450 = vmatpush1.msra.mxu0 0.0
    %451 = vmatprep.subr.mxu0 0.0
    %452 = vmatpush1.msra.mxu0 0.0
    %453 = vmatprep.subr.mxu0 0.0
    %454 = vmatpush1.msra.mxu0 0.0
    %455 = vmatprep.subr.mxu0 0.0
    %456 = vmatpush1.msra.mxu0 0.0
    %457 = vmatprep.subr.mxu0 0.0
    %458 = vmatpush1.msra.mxu0 0.0
    %459 = vmatprep.subr.mxu0 0.0
    %460 = vmatpush1.msra.mxu0 0.0
    %461 = vmatprep.subr.mxu0 0.0
    %462 = vmatpush1.msra.mxu0 0.0
    %463 = vmatprep.subr.mxu0 0.0
    %464 = vmatpush1.msra.mxu0 0.0
    %465 = vmatprep.subr.mxu0 0.0
    %466 = vmatpush1.msra.mxu0 0.0
    %467 = vmatprep.subr.mxu0 0.0
    %468 = vmatpush1.msra.mxu0 0.0
    %469 = vmatprep.subr.mxu0 0.0
    %470 = vmatpush1.msra.mxu0 0.0
    %471 = vmatprep.subr.mxu0 0.0
    %472 = vmatpush1.msra.mxu0 0.0
    %473 = vmatprep.subr.mxu0 0.0
    %474 = vmatpush1.msra.mxu0 0.0
    %475 = vmatprep.subr.mxu0 0.0
    %476 = vmatpush1.msra.mxu0 0.0
    %477 = vmatprep.subr.mxu0 0.0
    %478 = vmatpush1.msra.mxu0 0.0
    %479 = vmatprep.subr.mxu0 0.0
    %480 = vmatpush1.msra.mxu0 0.0
    %481 = vmatprep.subr.mxu0 0.0
    %482 = vmatpush1.msra.mxu0 0.0
    %483 = vmatprep.subr.mxu0 0.0
    %484 = vmatpush1.msra.mxu0 0.0
    %485 = vmatprep.subr.mxu0 0.0
    %486 = vmatpush1.msra.mxu0 0.0
    %487 = vmatprep.subr.mxu0 0.0
    %488 = vmatpush1.msra.mxu0 0.0
    %489 = vmatprep.subr.mxu0 0.0
    %490 = vmatpush1.msra.mxu0 0.0
    %491 = vmatprep.subr.mxu0 0.0
    %492 = vmatpush1.msra.mxu0 0.0
    %493 = vmatprep.subr.mxu0 0.0
    %494 = vmatpush1.msra.mxu0 0.0
    %495 = vmatprep.subr.mxu0 0.0
    %496 = vmatpush1.msra.mxu0 0.0
    %497 = vmatprep.subr.mxu0 0.0
    %498 = vmatpush1.msra.mxu0 0.0
    %499 = vmatprep.subr.mxu0 0.0
    %500 = vmatpush1.msra.mxu0 0.0
    %501 = vmatprep.subr.mxu0 0.0
    %502 = vmatpush1.msra.mxu0 0.0
    %503 = vmatprep.mubr.f32.mxu0 0.0
    %504 = vmatmul.mubr.f32.gmra.mrb[0].mxu0 %v303
    %v505 = vpop.f32.mrb[0].mxu0
    %v506 = vadd.f32 0.0, %v505
    %v507 = vpop.f32.mrb[0].mxu0
    %508 = vmatprep.mubr.f32.mxu0 0.0
    %509 = vmatmul.mubr.f32.gmra.mrb[0].mxu0 %v306
    %v510 = vpop.f32.mrb[0].mxu0
    %v511 = vadd.f32 0.0, %v510
    %v512 = vpop.f32.mrb[0].mxu0
    %513 = vmatprep.mubr.f32.mxu0 0.0
    %514 = vmatmul.mubr.f32.gmra.mrb[0].mxu0 %v309
    %v515 = vpop.f32.mrb[0].mxu0
    %v516 = vadd.f32 0.0, %v515
    %v517 = vpop.f32.mrb[0].mxu0
    %518 = vmatprep.mubr.f32.mxu0 0.0
    %519 = vmatmul.mubr.f32.gmra.mrb[0].mxu0 %v312
    %v520 = vpop.f32.mrb[0].mxu0
    %v521 = vadd.f32 0.0, %v520
    %v522 = vpop.f32.mrb[0].mxu0
    %523 = vmatprep.mubr.f32.mxu0 0.0
    %524 = vmatmul.mubr.f32.gmra.mrb[0].mxu0 %v315
    %v525 = vpop.f32.mrb[0].mxu0
    %v526 = vadd.f32 0.0, %v525
    %v527 = vpop.f32.mrb[0].mxu0
    %528 = vmatprep.mubr.f32.mxu0 0.0
    %529 = vmatmul.mubr.f32.gmra.mrb[0].mxu0 %v318
    %v530 = vpop.f32.mrb[0].mxu0
    %v531 = vadd.f32 0.0, %v530
    %v532 = vpop.f32.mrb[0].mxu0
    %533 = vmatprep.mubr.f32.mxu0 0.0
    %534 = vmatmul.mubr.f32.gmra.mrb[0].mxu0 %v321
    %v535 = vpop.f32.mrb[0].mxu0
    %v536 = vadd.f32 0.0, %v535
    %v537 = vpop.f32.mrb[0].mxu0
    %538 = vmatprep.mubr.f32.mxu0 0.0
    %539 = vmatmul.mubr.f32.gmra.mrb[0].mxu0 %v324
    %v540 = vpop.f32.mrb[0].mxu0
    %v541 = vadd.f32 0.0, %v540
    %v542 = vpop.f32.mrb[0].mxu0
    %543 = vdwg.mxu0
    %v544 = vld [vmem:[%s6] sm:$0x1]
    %v546 = vlaneseq
    %v547 = vshrl.u32 %v546, 7
    %v548 = vsub.s32 0, %v547
    %v549 = vrot.slane %v544, %v548
    %v551 = vld [vmem:[%s5] sm:$0xff]
    %v552 = vld [vmem:[%s5 + $0x8] sm:$0xf]
    %v553 = vld [vmem:[%s5 + $0xc] sm:$0xff]
    %v554 = vld [vmem:[%s5 + $0x14] sm:$0xf]
    %v555 = vld [vmem:[%s5 + $0x18] sm:$0xff]
    %v556 = vld [vmem:[%s5 + $0x20] sm:$0xf]
    %v557 = vld [vmem:[%s5 + $0x24] sm:$0xff]
    %v558 = vld [vmem:[%s5 + $0x2c] sm:$0xf]
    %v559 = vld [vmem:[%s5 + $0x30] sm:$0xff]
    %v560 = vld [vmem:[%s5 + $0x38] sm:$0xf]
    %v561 = vld [vmem:[%s5 + $0x3c] sm:$0xff]
    %v562 = vld [vmem:[%s5 + $0x44] sm:$0xf]
    %v563 = vld [vmem:[%s5 + $0x48] sm:$0xff]
    %v564 = vld [vmem:[%s5 + $0x50] sm:$0xf]
    %v565 = vld [vmem:[%s5 + $0x54] sm:$0xff]
    %v566 = vld [vmem:[%s5 + $0x5c] sm:$0xf]
    %v567 = vld [vmem:[%s5 + $0x60] sm:$0xff]
    %v568 = vld [vmem:[%s5 + $0x68] sm:$0xf]
    %v569 = vld [vmem:[%s5 + $0x6c] sm:$0xff]
    %v570 = vld [vmem:[%s5 + $0x74] sm:$0xf]
    %v571 = vld [vmem:[%s5 + $0x78] sm:$0xff]
    %v572 = vld [vmem:[%s5 + $0x80] sm:$0xf]
    %v573 = vld [vmem:[%s5 + $0x84] sm:$0xff]
    %v574 = vld [vmem:[%s5 + $0x8c] sm:$0xf]
    %v575 = vld [vmem:[%s5 + $0x90] sm:$0xff]
    %v576 = vld [vmem:[%s5 + $0x98] sm:$0xf]
    %v577 = vld [vmem:[%s5 + $0x9c] sm:$0xff]
    %v578 = vld [vmem:[%s5 + $0xa4] sm:$0xf]
    %v579 = vld [vmem:[%s5 + $0xa8] sm:$0xff]
    %v580 = vld [vmem:[%s5 + $0xb0] sm:$0xf]
    %v581 = vld [vmem:[%s5 + $0xb4] sm:$0xff]
    %v582 = vld [vmem:[%s5 + $0xbc] sm:$0xf]
    %v583 = vxor.u32 %v393, 2147483648
    %v584 = vmul.f32 %v583, 1.442695
    %v585 = vpow.pop %v584
    %v586 = vadd.f32 %v585, 1.0
    %v587 = vrcp.pop %v586
    %v588 = vmul.f32 1.0, %v587
    %v589 = vxor.u32 %v395, 2147483648
    %v590 = vmul.f32 %v589, 1.442695
    %v591 = vpow.pop %v590
    %v592 = vadd.f32 %v591, 1.0
    %v593 = vrcp.pop %v592
    %v594 = vmul.f32 1.0, %v593
    %v595 = vmul.f32 %v588, %v549
    %v596 = vadd.f32 %v506, %v595
    %v597 = vtanh.pop %v596
    %v598 = vmul.f32 %v594, %v597
    %v599 = vsub.f32 %v597, %v598
    %v600 = vpack.c.bf16 %v599, %v599
    %v633 = vunpack.c.l.b16 %v551
    %v634 = vunpack.c.h.b16 %v551
    %v635 = vunpack.c.l.b16 %v552
    %v636 = vunpack.c.l.b16 %v553
    %v637 = vunpack.c.h.b16 %v553
    %v638 = vunpack.c.l.b16 %v554
    %v639 = vunpack.c.l.b16 %v555
    %v640 = vunpack.c.h.b16 %v555
    %v641 = vunpack.c.l.b16 %v556
    %v642 = vunpack.c.l.b16 %v557
    %v643 = vunpack.c.h.b16 %v557
    %v644 = vunpack.c.l.b16 %v558
    %v645 = vunpack.c.l.b16 %v559
    %v646 = vunpack.c.h.b16 %v559
    %v647 = vunpack.c.l.b16 %v560
    %v648 = vunpack.c.l.b16 %v561
    %v649 = vunpack.c.h.b16 %v561
    %v650 = vunpack.c.l.b16 %v562
    %v651 = vunpack.c.l.b16 %v563
    %v652 = vunpack.c.h.b16 %v563
    %v653 = vunpack.c.l.b16 %v564
    %v654 = vunpack.c.l.b16 %v565
    %v655 = vunpack.c.h.b16 %v565
    %v656 = vunpack.c.l.b16 %v566
    %v657 = vunpack.c.l.b16 %v567
    %v658 = vunpack.c.h.b16 %v567
    %v659 = vunpack.c.l.b16 %v568
    %v660 = vunpack.c.l.b16 %v569
    %v661 = vunpack.c.h.b16 %v569
    %v662 = vunpack.c.l.b16 %v570
    %v663 = vunpack.c.l.b16 %v571
    %v664 = vunpack.c.h.b16 %v571
    %v665 = vunpack.c.l.b16 %v572
    %v666 = vunpack.c.l.b16 %v573
    %v667 = vunpack.c.h.b16 %v573
    %v668 = vunpack.c.l.b16 %v574
    %v669 = vunpack.c.l.b16 %v575
    %v670 = vunpack.c.h.b16 %v575
    %v671 = vunpack.c.l.b16 %v576
    %v672 = vunpack.c.l.b16 %v577
    %v673 = vunpack.c.h.b16 %v577
    %v674 = vunpack.c.l.b16 %v578
    %v675 = vunpack.c.l.b16 %v579
    %v676 = vunpack.c.h.b16 %v579
    %v677 = vunpack.c.l.b16 %v580
    %v678 = vunpack.c.l.b16 %v581
    %v679 = vunpack.c.h.b16 %v581
    %v680 = vunpack.c.l.b16 %v582
    %v681 = vpack.c.b16 %v636, %v633
    %v682 = vpack.c.b16 %v637, %v634
    %v683 = vpack.c.b16 %v638, %v635
    %v684 = vpack.c.b16 %v642, %v639
    %v685 = vpack.c.b16 %v643, %v640
    %v686 = vpack.c.b16 %v644, %v641
    %v687 = vpack.c.b16 %v648, %v645
    %v688 = vpack.c.b16 %v649, %v646
    %v689 = vpack.c.b16 %v650, %v647
    %v690 = vpack.c.b16 %v654, %v651
    %v691 = vpack.c.b16 %v655, %v652
    %v692 = vpack.c.b16 %v656, %v653
    %v693 = vpack.c.b16 %v660, %v657
    %v694 = vpack.c.b16 %v661, %v658
    %v695 = vpack.c.b16 %v662, %v659
    %v696 = vpack.c.b16 %v666, %v663
    %v697 = vpack.c.b16 %v667, %v664
    %v698 = vpack.c.b16 %v668, %v665
    %v699 = vpack.c.b16 %v672, %v669
    %v700 = vpack.c.b16 %v673, %v670
    %v701 = vpack.c.b16 %v674, %v671
    %v702 = vpack.c.b16 %v678, %v675
    %v703 = vpack.c.b16 %v679, %v676
    %v704 = vpack.c.b16 %v680, %v677
    %729 = vmatprep.subr.bf16.mxu0 %v682
    %730 = vmatpush1.bf16.msra.mxu0 %v681
    %731 = vmatprep.subr.bf16.mxu0 %v685
    %732 = vmatpush1.bf16.msra.mxu0 %v684
    %733 = vmatprep.subr.bf16.mxu0 %v688
    %734 = vmatpush1.bf16.msra.mxu0 %v687
    %735 = vmatprep.subr.bf16.mxu0 %v691
    %736 = vmatpush1.bf16.msra.mxu0 %v690
    %737 = vmatprep.subr.bf16.mxu0 %v694
    %738 = vmatpush1.bf16.msra.mxu0 %v693
    %739 = vmatprep.subr.bf16.mxu0 %v697
    %740 = vmatpush1.bf16.msra.mxu0 %v696
    %741 = vmatprep.subr.bf16.mxu0 %v700
    %742 = vmatpush1.bf16.msra.mxu0 %v699
    %743 = vmatprep.subr.bf16.mxu0 %v703
    %744 = vmatpush1.bf16.msra.mxu0 %v702
    %745 = vmatprep.subr.bf16.mxu0 0
    %746 = vmatpush1.bf16.msra.mxu0 0
    %747 = vmatprep.subr.bf16.mxu0 0
    %748 = vmatpush1.bf16.msra.mxu0 0
    %749 = vmatprep.subr.bf16.mxu0 0
    %750 = vmatpush1.bf16.msra.mxu0 0
    %751 = vmatprep.subr.bf16.mxu0 0
    %752 = vmatpush1.bf16.msra.mxu0 0
    %753 = vmatprep.subr.bf16.mxu0 0
    %754 = vmatpush1.bf16.msra.mxu0 0
    %755 = vmatprep.subr.bf16.mxu0 0
    %756 = vmatpush1.bf16.msra.mxu0 0
    %757 = vmatprep.subr.bf16.mxu0 0
    %758 = vmatpush1.bf16.msra.mxu0 0
    %759 = vmatprep.subr.bf16.mxu0 0
    %760 = vmatpush1.bf16.msra.mxu0 0
    %761 = vmatprep.mubr.bf16.mxu0 0
    %762 = vmatmul.mubr.bf16.gmra.mrb[0].mxu0 %v600
    %v763 = vpop.f32.mrb[0].mxu0
    %v764 = vadd.f32 0.0, %v763
    %v765 = vpop.f32.mrb[0].mxu0
    %v766 = vadd.f32 0.0, %v765
    %v767 = vpop.f32.mrb[0].mxu0
    %v768 = vpop.f32.mrb[0].mxu0
    %769 = vdwg.mxu0
    %770 = vmatprep.subr.bf16.mxu0 0
    %771 = vmatpush1.bf16.msra.mxu0 %v683
    %772 = vmatprep.subr.bf16.mxu0 0
    %773 = vmatpush1.bf16.msra.mxu0 %v686
    %774 = vmatprep.subr.bf16.mxu0 0
    %775 = vmatpush1.bf16.msra.mxu0 %v689
    %776 = vmatprep.subr.bf16.mxu0 0
    %777 = vmatpush1.bf16.msra.mxu0 %v692
    %778 = vmatprep.subr.bf16.mxu0 0
    %779 = vmatpush1.bf16.msra.mxu0 %v695
    %780 = vmatprep.subr.bf16.mxu0 0
    %781 = vmatpush1.bf16.msra.mxu0 %v698
    %782 = vmatprep.subr.bf16.mxu0 0
    %783 = vmatpush1.bf16.msra.mxu0 %v701
    %784 = vmatprep.subr.bf16.mxu0 0
    %785 = vmatpush1.bf16.msra.mxu0 %v704
    %786 = vmatprep.subr.bf16.mxu0 0
    %787 = vmatpush1.bf16.msra.mxu0 0
    %788 = vmatprep.subr.bf16.mxu0 0
    %789 = vmatpush1.bf16.msra.mxu0 0
    %790 = vmatprep.subr.bf16.mxu0 0
    %791 = vmatpush1.bf16.msra.mxu0 0
    %792 = vmatprep.subr.bf16.mxu0 0
    %793 = vmatpush1.bf16.msra.mxu0 0
    %794 = vmatprep.subr.bf16.mxu0 0
    %795 = vmatpush1.bf16.msra.mxu0 0
    %796 = vmatprep.subr.bf16.mxu0 0
    %797 = vmatpush1.bf16.msra.mxu0 0
    %798 = vmatprep.subr.bf16.mxu0 0
    %799 = vmatpush1.bf16.msra.mxu0 0
    %800 = vmatprep.subr.bf16.mxu0 0
    %801 = vmatpush1.bf16.msra.mxu0 0
    %802 = vmatprep.mubr.bf16.mxu0 0
    %803 = vmatmul.mubr.bf16.gmra.mrb[0].mxu0 %v600
    %v804 = vpop.f32.mrb[0].mxu0
    %v805 = vadd.f32 0.0, %v804
    %v806 = vpop.f32.mrb[0].mxu0
    %v807 = vpop.f32.mrb[0].mxu0
    %v808 = vpop.f32.mrb[0].mxu0
    %809 = vdwg.mxu0
    %v810 = vadd.f32 %v399, %v764
    %v811 = vxor.u32 %v810, 2147483648
    %v812 = vmul.f32 %v811, 1.442695
    %v813 = vpow.pop %v812
    %v814 = vadd.f32 %v813, 1.0
    %v815 = vrcp.pop %v814
    %v816 = vmul.f32 1.0, %v815
    %v817 = vadd.f32 %v401, %v766
    %v818 = vxor.u32 %v817, 2147483648
    %v819 = vmul.f32 %v818, 1.442695
    %v820 = vpow.pop %v819
    %v821 = vadd.f32 %v820, 1.0
    %v822 = vrcp.pop %v821
    %v823 = vmul.f32 1.0, %v822
    %v824 = vadd.f32 %v805, %v549
    %v825 = vmul.f32 %v816, %v824
    %v826 = vadd.f32 %v511, %v825
    %v827 = vtanh.pop %v826
    %v828 = vsub.f32 %v599, %v827
    %v829 = vmul.f32 %v823, %v828
    %v830 = vadd.f32 %v827, %v829
    %v831 = vpack.c.bf16 %v830, %v830
    %832 = vmatprep.subr.bf16.mxu0 %v682
    %833 = vmatpush1.bf16.msra.mxu0 %v681
    %834 = vmatprep.subr.bf16.mxu0 %v685
    %835 = vmatpush1.bf16.msra.mxu0 %v684
    %836 = vmatprep.subr.bf16.mxu0 %v688
    %837 = vmatpush1.bf16.msra.mxu0 %v687
    %838 = vmatprep.subr.bf16.mxu0 %v691
    %839 = vmatpush1.bf16.msra.mxu0 %v690
    %840 = vmatprep.subr.bf16.mxu0 %v694
    %841 = vmatpush1.bf16.msra.mxu0 %v693
    %842 = vmatprep.subr.bf16.mxu0 %v697
    %843 = vmatpush1.bf16.msra.mxu0 %v696
    %844 = vmatprep.subr.bf16.mxu0 %v700
    %845 = vmatpush1.bf16.msra.mxu0 %v699
    %846 = vmatprep.subr.bf16.mxu0 %v703
    %847 = vmatpush1.bf16.msra.mxu0 %v702
    %848 = vmatprep.subr.bf16.mxu0 0
    %849 = vmatpush1.bf16.msra.mxu0 0
    %850 = vmatprep.subr.bf16.mxu0 0
    %851 = vmatpush1.bf16.msra.mxu0 0
    %852 = vmatprep.subr.bf16.mxu0 0
    %853 = vmatpush1.bf16.msra.mxu0 0
    %854 = vmatprep.subr.bf16.mxu0 0
    %855 = vmatpush1.bf16.msra.mxu0 0
    %856 = vmatprep.subr.bf16.mxu0 0
    %857 = vmatpush1.bf16.msra.mxu0 0
    %858 = vmatprep.subr.bf16.mxu0 0
    %859 = vmatpush1.bf16.msra.mxu0 0
    %860 = vmatprep.subr.bf16.mxu0 0
    %861 = vmatpush1.bf16.msra.mxu0 0
    %862 = vmatprep.subr.bf16.mxu0 0
    %863 = vmatpush1.bf16.msra.mxu0 0
    %864 = vmatprep.mubr.bf16.mxu0 0
    %865 = vmatmul.mubr.bf16.gmra.mrb[0].mxu0 %v831
    %v866 = vpop.f32.mrb[0].mxu0
    %v867 = vadd.f32 0.0, %v866
    %v868 = vpop.f32.mrb[0].mxu0
    %v869 = vadd.f32 0.0, %v868
    %v870 = vpop.f32.mrb[0].mxu0
    %v871 = vpop.f32.mrb[0].mxu0
    %872 = vdwg.mxu0
    %873 = vmatprep.subr.bf16.mxu0 0
    %874 = vmatpush1.bf16.msra.mxu0 %v683
    %875 = vmatprep.subr.bf16.mxu0 0
    %876 = vmatpush1.bf16.msra.mxu0 %v686
    %877 = vmatprep.subr.bf16.mxu0 0
    %878 = vmatpush1.bf16.msra.mxu0 %v689
    %879 = vmatprep.subr.bf16.mxu0 0
    %880 = vmatpush1.bf16.msra.mxu0 %v692
    %881 = vmatprep.subr.bf16.mxu0 0
    %882 = vmatpush1.bf16.msra.mxu0 %v695
    %883 = vmatprep.subr.bf16.mxu0 0
    %884 = vmatpush1.bf16.msra.mxu0 %v698
    %885 = vmatprep.subr.bf16.mxu0 0
    %886 = vmatpush1.bf16.msra.mxu0 %v701
    %887 = vmatprep.subr.bf16.mxu0 0
    %888 = vmatpush1.bf16.msra.mxu0 %v704
    %889 = vmatprep.subr.bf16.mxu0 0
    %890 = vmatpush1.bf16.msra.mxu0 0
    %891 = vmatprep.subr.bf16.mxu0 0
    %892 = vmatpush1.bf16.msra.mxu0 0
    %893 = vmatprep.subr.bf16.mxu0 0
    %894 = vmatpush1.bf16.msra.mxu0 0
    %895 = vmatprep.subr.bf16.mxu0 0
    %896 = vmatpush1.bf16.msra.mxu0 0
    %897 = vmatprep.subr.bf16.mxu0 0
    %898 = vmatpush1.bf16.msra.mxu0 0
    %899 = vmatprep.subr.bf16.mxu0 0
    %900 = vmatpush1.bf16.msra.mxu0 0
    %901 = vmatprep.subr.bf16.mxu0 0
    %902 = vmatpush1.bf16.msra.mxu0 0
    %903 = vmatprep.subr.bf16.mxu0 0
    %904 = vmatpush1.bf16.msra.mxu0 0
    %905 = vmatprep.mubr.bf16.mxu0 0
    %906 = vmatmul.mubr.bf16.gmra.mrb[0].mxu0 %v831
    %v907 = vpop.f32.mrb[0].mxu0
    %v908 = vadd.f32 0.0, %v907
    %v909 = vpop.f32.mrb[0].mxu0
    %v910 = vpop.f32.mrb[0].mxu0
    %v911 = vpop.f32.mrb[0].mxu0
    %912 = vdwg.mxu0
    %v913 = vadd.f32 %v405, %v867
    %v914 = vxor.u32 %v913, 2147483648
    %v915 = vmul.f32 %v914, 1.442695
    %v916 = vpow.pop %v915
    %v917 = vadd.f32 %v916, 1.0
    %v918 = vrcp.pop %v917
    %v919 = vmul.f32 1.0, %v918
    %v920 = vadd.f32 %v407, %v869
    %v921 = vxor.u32 %v920, 2147483648
    %v922 = vmul.f32 %v921, 1.442695
    %v923 = vpow.pop %v922
    %v924 = vadd.f32 %v923, 1.0
    %v925 = vrcp.pop %v924
    %v926 = vmul.f32 1.0, %v925
    %v927 = vadd.f32 %v908, %v549
    %v928 = vmul.f32 %v919, %v927
    %v929 = vadd.f32 %v516, %v928
    %v930 = vtanh.pop %v929
    %v931 = vsub.f32 %v830, %v930
    %v932 = vmul.f32 %v926, %v931
    %v933 = vadd.f32 %v930, %v932
    %v934 = vpack.c.bf16 %v933, %v933
    %935 = vmatprep.subr.bf16.mxu0 %v682
    %936 = vmatpush1.bf16.msra.mxu0 %v681
    %937 = vmatprep.subr.bf16.mxu0 %v685
    %938 = vmatpush1.bf16.msra.mxu0 %v684
    %939 = vmatprep.subr.bf16.mxu0 %v688
    %940 = vmatpush1.bf16.msra.mxu0 %v687
    %941 = vmatprep.subr.bf16.mxu0 %v691
    %942 = vmatpush1.bf16.msra.mxu0 %v690
    %943 = vmatprep.subr.bf16.mxu0 %v694
    %944 = vmatpush1.bf16.msra.mxu0 %v693
    %945 = vmatprep.subr.bf16.mxu0 %v697
    %946 = vmatpush1.bf16.msra.mxu0 %v696
    %947 = vmatprep.subr.bf16.mxu0 %v700
    %948 = vmatpush1.bf16.msra.mxu0 %v699
    %949 = vmatprep.subr.bf16.mxu0 %v703
    %950 = vmatpush1.bf16.msra.mxu0 %v702
    %951 = vmatprep.subr.bf16.mxu0 0
    %952 = vmatpush1.bf16.msra.mxu0 0
    %953 = vmatprep.subr.bf16.mxu0 0
    %954 = vmatpush1.bf16.msra.mxu0 0
    %955 = vmatprep.subr.bf16.mxu0 0
    %956 = vmatpush1.bf16.msra.mxu0 0
    %957 = vmatprep.subr.bf16.mxu0 0
    %958 = vmatpush1.bf16.msra.mxu0 0
    %959 = vmatprep.subr.bf16.mxu0 0
    %960 = vmatpush1.bf16.msra.mxu0 0
    %961 = vmatprep.subr.bf16.mxu0 0
    %962 = vmatpush1.bf16.msra.mxu0 0
    %963 = vmatprep.subr.bf16.mxu0 0
    %964 = vmatpush1.bf16.msra.mxu0 0
    %965 = vmatprep.subr.bf16.mxu0 0
    %966 = vmatpush1.bf16.msra.mxu0 0
    %967 = vmatprep.mubr.bf16.mxu0 0
    %968 = vmatmul.mubr.bf16.gmra.mrb[0].mxu0 %v934
    %v969 = vpop.f32.mrb[0].mxu0
    %v970 = vadd.f32 0.0, %v969
    %v971 = vpop.f32.mrb[0].mxu0
    %v972 = vadd.f32 0.0, %v971
    %v973 = vpop.f32.mrb[0].mxu0
    %v974 = vpop.f32.mrb[0].mxu0
    %975 = vdwg.mxu0
    %976 = vmatprep.subr.bf16.mxu0 0
    %977 = vmatpush1.bf16.msra.mxu0 %v683
    %978 = vmatprep.subr.bf16.mxu0 0
    %979 = vmatpush1.bf16.msra.mxu0 %v686
    %980 = vmatprep.subr.bf16.mxu0 0
    %981 = vmatpush1.bf16.msra.mxu0 %v689
    %982 = vmatprep.subr.bf16.mxu0 0
    %983 = vmatpush1.bf16.msra.mxu0 %v692
    %984 = vmatprep.subr.bf16.mxu0 0
    %985 = vmatpush1.bf16.msra.mxu0 %v695
    %986 = vmatprep.subr.bf16.mxu0 0
    %987 = vmatpush1.bf16.msra.mxu0 %v698
    %988 = vmatprep.subr.bf16.mxu0 0
    %989 = vmatpush1.bf16.msra.mxu0 %v701
    %990 = vmatprep.subr.bf16.mxu0 0
    %991 = vmatpush1.bf16.msra.mxu0 %v704
    %992 = vmatprep.subr.bf16.mxu0 0
    %993 = vmatpush1.bf16.msra.mxu0 0
    %994 = vmatprep.subr.bf16.mxu0 0
    %995 = vmatpush1.bf16.msra.mxu0 0
    %996 = vmatprep.subr.bf16.mxu0 0
    %997 = vmatpush1.bf16.msra.mxu0 0
    %998 = vmatprep.subr.bf16.mxu0 0
    %999 = vmatpush1.bf16.msra.mxu0 0
    %1000 = vmatprep.subr.bf16.mxu0 0
    %1001 = vmatpush1.bf16.msra.mxu0 0
    %1002 = vmatprep.subr.bf16.mxu0 0
    %1003 = vmatpush1.bf16.msra.mxu0 0
    %1004 = vmatprep.subr.bf16.mxu0 0
    %1005 = vmatpush1.bf16.msra.mxu0 0
    %1006 = vmatprep.subr.bf16.mxu0 0
    %1007 = vmatpush1.bf16.msra.mxu0 0
    %1008 = vmatprep.mubr.bf16.mxu0 0
    %1009 = vmatmul.mubr.bf16.gmra.mrb[0].mxu0 %v934
    %v1010 = vpop.f32.mrb[0].mxu0
    %v1011 = vadd.f32 0.0, %v1010
    %v1012 = vpop.f32.mrb[0].mxu0
    %v1013 = vpop.f32.mrb[0].mxu0
    %v1014 = vpop.f32.mrb[0].mxu0
    %1015 = vdwg.mxu0
    %v1016 = vadd.f32 %v411, %v970
    %v1017 = vxor.u32 %v1016, 2147483648
    %v1018 = vmul.f32 %v1017, 1.442695
    %v1019 = vpow.pop %v1018
    %v1020 = vadd.f32 %v1019, 1.0
    %v1021 = vrcp.pop %v1020
    %v1022 = vmul.f32 1.0, %v1021
    %v1023 = vadd.f32 %v413, %v972
    %v1024 = vxor.u32 %v1023, 2147483648
    %v1025 = vmul.f32 %v1024, 1.442695
    %v1026 = vpow.pop %v1025
    %v1027 = vadd.f32 %v1026, 1.0
    %v1028 = vrcp.pop %v1027
    %v1029 = vmul.f32 1.0, %v1028
    %v1030 = vadd.f32 %v1011, %v549
    %v1031 = vmul.f32 %v1022, %v1030
    %v1032 = vadd.f32 %v521, %v1031
    %v1033 = vtanh.pop %v1032
    %v1034 = vsub.f32 %v933, %v1033
    %v1035 = vmul.f32 %v1029, %v1034
    %v1036 = vadd.f32 %v1033, %v1035
    %v1037 = vpack.c.bf16 %v1036, %v1036
    %1038 = vmatprep.subr.bf16.mxu0 %v682
    %1039 = vmatpush1.bf16.msra.mxu0 %v681
    %1040 = vmatprep.subr.bf16.mxu0 %v685
    %1041 = vmatpush1.bf16.msra.mxu0 %v684
    %1042 = vmatprep.subr.bf16.mxu0 %v688
    %1043 = vmatpush1.bf16.msra.mxu0 %v687
    %1044 = vmatprep.subr.bf16.mxu0 %v691
    %1045 = vmatpush1.bf16.msra.mxu0 %v690
    %1046 = vmatprep.subr.bf16.mxu0 %v694
    %1047 = vmatpush1.bf16.msra.mxu0 %v693
    %1048 = vmatprep.subr.bf16.mxu0 %v697
    %1049 = vmatpush1.bf16.msra.mxu0 %v696
    %1050 = vmatprep.subr.bf16.mxu0 %v700
    %1051 = vmatpush1.bf16.msra.mxu0 %v699
    %1052 = vmatprep.subr.bf16.mxu0 %v703
    %1053 = vmatpush1.bf16.msra.mxu0 %v702
    %1054 = vmatprep.subr.bf16.mxu0 0
    %1055 = vmatpush1.bf16.msra.mxu0 0
    %1056 = vmatprep.subr.bf16.mxu0 0
    %1057 = vmatpush1.bf16.msra.mxu0 0
    %1058 = vmatprep.subr.bf16.mxu0 0
    %1059 = vmatpush1.bf16.msra.mxu0 0
    %1060 = vmatprep.subr.bf16.mxu0 0
    %1061 = vmatpush1.bf16.msra.mxu0 0
    %1062 = vmatprep.subr.bf16.mxu0 0
    %1063 = vmatpush1.bf16.msra.mxu0 0
    %1064 = vmatprep.subr.bf16.mxu0 0
    %1065 = vmatpush1.bf16.msra.mxu0 0
    %1066 = vmatprep.subr.bf16.mxu0 0
    %1067 = vmatpush1.bf16.msra.mxu0 0
    %1068 = vmatprep.subr.bf16.mxu0 0
    %1069 = vmatpush1.bf16.msra.mxu0 0
    %1070 = vmatprep.mubr.bf16.mxu0 0
    %1071 = vmatmul.mubr.bf16.gmra.mrb[0].mxu0 %v1037
    %v1072 = vpop.f32.mrb[0].mxu0
    %v1073 = vadd.f32 0.0, %v1072
    %v1074 = vpop.f32.mrb[0].mxu0
    %v1075 = vadd.f32 0.0, %v1074
    %v1076 = vpop.f32.mrb[0].mxu0
    %v1077 = vpop.f32.mrb[0].mxu0
    %1078 = vdwg.mxu0
    %1079 = vmatprep.subr.bf16.mxu0 0
    %1080 = vmatpush1.bf16.msra.mxu0 %v683
    %1081 = vmatprep.subr.bf16.mxu0 0
    %1082 = vmatpush1.bf16.msra.mxu0 %v686
    %1083 = vmatprep.subr.bf16.mxu0 0
    %1084 = vmatpush1.bf16.msra.mxu0 %v689
    %1085 = vmatprep.subr.bf16.mxu0 0
    %1086 = vmatpush1.bf16.msra.mxu0 %v692
    %1087 = vmatprep.subr.bf16.mxu0 0
    %1088 = vmatpush1.bf16.msra.mxu0 %v695
    %1089 = vmatprep.subr.bf16.mxu0 0
    %1090 = vmatpush1.bf16.msra.mxu0 %v698
    %1091 = vmatprep.subr.bf16.mxu0 0
    %1092 = vmatpush1.bf16.msra.mxu0 %v701
    %1093 = vmatprep.subr.bf16.mxu0 0
    %1094 = vmatpush1.bf16.msra.mxu0 %v704
    %1095 = vmatprep.subr.bf16.mxu0 0
    %1096 = vmatpush1.bf16.msra.mxu0 0
    %1097 = vmatprep.subr.bf16.mxu0 0
    %1098 = vmatpush1.bf16.msra.mxu0 0
    %1099 = vmatprep.subr.bf16.mxu0 0
    %1100 = vmatpush1.bf16.msra.mxu0 0
    %1101 = vmatprep.subr.bf16.mxu0 0
    %1102 = vmatpush1.bf16.msra.mxu0 0
    %1103 = vmatprep.subr.bf16.mxu0 0
    %1104 = vmatpush1.bf16.msra.mxu0 0
    %1105 = vmatprep.subr.bf16.mxu0 0
    %1106 = vmatpush1.bf16.msra.mxu0 0
    %1107 = vmatprep.subr.bf16.mxu0 0
    %1108 = vmatpush1.bf16.msra.mxu0 0
    %1109 = vmatprep.subr.bf16.mxu0 0
    %1110 = vmatpush1.bf16.msra.mxu0 0
    %1111 = vmatprep.mubr.bf16.mxu0 0
    %1112 = vmatmul.mubr.bf16.gmra.mrb[0].mxu0 %v1037
    %v1113 = vpop.f32.mrb[0].mxu0
    %v1114 = vadd.f32 0.0, %v1113
    %v1115 = vpop.f32.mrb[0].mxu0
    %v1116 = vpop.f32.mrb[0].mxu0
    %v1117 = vpop.f32.mrb[0].mxu0
    %1118 = vdwg.mxu0
    %v1119 = vadd.f32 %v417, %v1073
    %v1120 = vxor.u32 %v1119, 2147483648
    %v1121 = vmul.f32 %v1120, 1.442695
    %v1122 = vpow.pop %v1121
    %v1123 = vadd.f32 %v1122, 1.0
    %v1124 = vrcp.pop %v1123
    %v1125 = vmul.f32 1.0, %v1124
    %v1126 = vadd.f32 %v419, %v1075
    %v1127 = vxor.u32 %v1126, 2147483648
    %v1128 = vmul.f32 %v1127, 1.442695
    %v1129 = vpow.pop %v1128
    %v1130 = vadd.f32 %v1129, 1.0
    %v1131 = vrcp.pop %v1130
    %v1132 = vmul.f32 1.0, %v1131
    %v1133 = vadd.f32 %v1114, %v549
    %v1134 = vmul.f32 %v1125, %v1133
    %v1135 = vadd.f32 %v526, %v1134
    %v1136 = vtanh.pop %v1135
    %v1137 = vsub.f32 %v1036, %v1136
    %v1138 = vmul.f32 %v1132, %v1137
    %v1139 = vadd.f32 %v1136, %v1138
    %v1140 = vpack.c.bf16 %v1139, %v1139
    %1141 = vmatprep.subr.bf16.mxu0 %v682
    %1142 = vmatpush1.bf16.msra.mxu0 %v681
    %1143 = vmatprep.subr.bf16.mxu0 %v685
    %1144 = vmatpush1.bf16.msra.mxu0 %v684
    %1145 = vmatprep.subr.bf16.mxu0 %v688
    %1146 = vmatpush1.bf16.msra.mxu0 %v687
    %1147 = vmatprep.subr.bf16.mxu0 %v691
    %1148 = vmatpush1.bf16.msra.mxu0 %v690
    %1149 = vmatprep.subr.bf16.mxu0 %v694
    %1150 = vmatpush1.bf16.msra.mxu0 %v693
    %1151 = vmatprep.subr.bf16.mxu0 %v697
    %1152 = vmatpush1.bf16.msra.mxu0 %v696
    %1153 = vmatprep.subr.bf16.mxu0 %v700
    %1154 = vmatpush1.bf16.msra.mxu0 %v699
    %1155 = vmatprep.subr.bf16.mxu0 %v703
    %1156 = vmatpush1.bf16.msra.mxu0 %v702
    %1157 = vmatprep.subr.bf16.mxu0 0
    %1158 = vmatpush1.bf16.msra.mxu0 0
    %1159 = vmatprep.subr.bf16.mxu0 0
    %1160 = vmatpush1.bf16.msra.mxu0 0
    %1161 = vmatprep.subr.bf16.mxu0 0
    %1162 = vmatpush1.bf16.msra.mxu0 0
    %1163 = vmatprep.subr.bf16.mxu0 0
    %1164 = vmatpush1.bf16.msra.mxu0 0
    %1165 = vmatprep.subr.bf16.mxu0 0
    %1166 = vmatpush1.bf16.msra.mxu0 0
    %1167 = vmatprep.subr.bf16.mxu0 0
    %1168 = vmatpush1.bf16.msra.mxu0 0
    %1169 = vmatprep.subr.bf16.mxu0 0
    %1170 = vmatpush1.bf16.msra.mxu0 0
    %1171 = vmatprep.subr.bf16.mxu0 0
    %1172 = vmatpush1.bf16.msra.mxu0 0
    %1173 = vmatprep.mubr.bf16.mxu0 0
    %1174 = vmatmul.mubr.bf16.gmra.mrb[0].mxu0 %v1140
    %v1175 = vpop.f32.mrb[0].mxu0
    %v1176 = vadd.f32 0.0, %v1175
    %v1177 = vpop.f32.mrb[0].mxu0
    %v1178 = vadd.f32 0.0, %v1177
    %v1179 = vpop.f32.mrb[0].mxu0
    %v1180 = vpop.f32.mrb[0].mxu0
    %1181 = vdwg.mxu0
    %1182 = vmatprep.subr.bf16.mxu0 0
    %1183 = vmatpush1.bf16.msra.mxu0 %v683
    %1184 = vmatprep.subr.bf16.mxu0 0
    %1185 = vmatpush1.bf16.msra.mxu0 %v686
    %1186 = vmatprep.subr.bf16.mxu0 0
    %1187 = vmatpush1.bf16.msra.mxu0 %v689
    %1188 = vmatprep.subr.bf16.mxu0 0
    %1189 = vmatpush1.bf16.msra.mxu0 %v692
    %1190 = vmatprep.subr.bf16.mxu0 0
    %1191 = vmatpush1.bf16.msra.mxu0 %v695
    %1192 = vmatprep.subr.bf16.mxu0 0
    %1193 = vmatpush1.bf16.msra.mxu0 %v698
    %1194 = vmatprep.subr.bf16.mxu0 0
    %1195 = vmatpush1.bf16.msra.mxu0 %v701
    %1196 = vmatprep.subr.bf16.mxu0 0
    %1197 = vmatpush1.bf16.msra.mxu0 %v704
    %1198 = vmatprep.subr.bf16.mxu0 0
    %1199 = vmatpush1.bf16.msra.mxu0 0
    %1200 = vmatprep.subr.bf16.mxu0 0
    %1201 = vmatpush1.bf16.msra.mxu0 0
    %1202 = vmatprep.subr.bf16.mxu0 0
    %1203 = vmatpush1.bf16.msra.mxu0 0
    %1204 = vmatprep.subr.bf16.mxu0 0
    %1205 = vmatpush1.bf16.msra.mxu0 0
    %1206 = vmatprep.subr.bf16.mxu0 0
    %1207 = vmatpush1.bf16.msra.mxu0 0
    %1208 = vmatprep.subr.bf16.mxu0 0
    %1209 = vmatpush1.bf16.msra.mxu0 0
    %1210 = vmatprep.subr.bf16.mxu0 0
    %1211 = vmatpush1.bf16.msra.mxu0 0
    %1212 = vmatprep.subr.bf16.mxu0 0
    %1213 = vmatpush1.bf16.msra.mxu0 0
    %1214 = vmatprep.mubr.bf16.mxu0 0
    %1215 = vmatmul.mubr.bf16.gmra.mrb[0].mxu0 %v1140
    %v1216 = vpop.f32.mrb[0].mxu0
    %v1217 = vadd.f32 0.0, %v1216
    %v1218 = vpop.f32.mrb[0].mxu0
    %v1219 = vpop.f32.mrb[0].mxu0
    %v1220 = vpop.f32.mrb[0].mxu0
    %1221 = vdwg.mxu0
    %v1222 = vadd.f32 %v423, %v1176
    %v1223 = vxor.u32 %v1222, 2147483648
    %v1224 = vmul.f32 %v1223, 1.442695
    %v1225 = vpow.pop %v1224
    %v1226 = vadd.f32 %v1225, 1.0
    %v1227 = vrcp.pop %v1226
    %v1228 = vmul.f32 1.0, %v1227
    %v1229 = vadd.f32 %v425, %v1178
    %v1230 = vxor.u32 %v1229, 2147483648
    %v1231 = vmul.f32 %v1230, 1.442695
    %v1232 = vpow.pop %v1231
    %v1233 = vadd.f32 %v1232, 1.0
    %v1234 = vrcp.pop %v1233
    %v1235 = vmul.f32 1.0, %v1234
    %v1236 = vadd.f32 %v1217, %v549
    %v1237 = vmul.f32 %v1228, %v1236
    %v1238 = vadd.f32 %v531, %v1237
    %v1239 = vtanh.pop %v1238
    %v1240 = vsub.f32 %v1139, %v1239
    %v1241 = vmul.f32 %v1235, %v1240
    %v1242 = vadd.f32 %v1239, %v1241
    %v1243 = vpack.c.bf16 %v1242, %v1242
    %1244 = vmatprep.subr.bf16.mxu0 %v682
    %1245 = vmatpush1.bf16.msra.mxu0 %v681
    %1246 = vmatprep.subr.bf16.mxu0 %v685
    %1247 = vmatpush1.bf16.msra.mxu0 %v684
    %1248 = vmatprep.subr.bf16.mxu0 %v688
    %1249 = vmatpush1.bf16.msra.mxu0 %v687
    %1250 = vmatprep.subr.bf16.mxu0 %v691
    %1251 = vmatpush1.bf16.msra.mxu0 %v690
    %1252 = vmatprep.subr.bf16.mxu0 %v694
    %1253 = vmatpush1.bf16.msra.mxu0 %v693
    %1254 = vmatprep.subr.bf16.mxu0 %v697
    %1255 = vmatpush1.bf16.msra.mxu0 %v696
    %1256 = vmatprep.subr.bf16.mxu0 %v700
    %1257 = vmatpush1.bf16.msra.mxu0 %v699
    %1258 = vmatprep.subr.bf16.mxu0 %v703
    %1259 = vmatpush1.bf16.msra.mxu0 %v702
    %1260 = vmatprep.subr.bf16.mxu0 0
    %1261 = vmatpush1.bf16.msra.mxu0 0
    %1262 = vmatprep.subr.bf16.mxu0 0
    %1263 = vmatpush1.bf16.msra.mxu0 0
    %1264 = vmatprep.subr.bf16.mxu0 0
    %1265 = vmatpush1.bf16.msra.mxu0 0
    %1266 = vmatprep.subr.bf16.mxu0 0
    %1267 = vmatpush1.bf16.msra.mxu0 0
    %1268 = vmatprep.subr.bf16.mxu0 0
    %1269 = vmatpush1.bf16.msra.mxu0 0
    %1270 = vmatprep.subr.bf16.mxu0 0
    %1271 = vmatpush1.bf16.msra.mxu0 0
    %1272 = vmatprep.subr.bf16.mxu0 0
    %1273 = vmatpush1.bf16.msra.mxu0 0
    %1274 = vmatprep.subr.bf16.mxu0 0
    %1275 = vmatpush1.bf16.msra.mxu0 0
    %1276 = vmatprep.mubr.bf16.mxu0 0
    %1277 = vmatmul.mubr.bf16.gmra.mrb[0].mxu0 %v1243
    %v1278 = vpop.f32.mrb[0].mxu0
    %v1279 = vadd.f32 0.0, %v1278
    %v1280 = vpop.f32.mrb[0].mxu0
    %v1281 = vadd.f32 0.0, %v1280
    %v1282 = vpop.f32.mrb[0].mxu0
    %v1283 = vpop.f32.mrb[0].mxu0
    %1284 = vdwg.mxu0
    %1285 = vmatprep.subr.bf16.mxu0 0
    %1286 = vmatpush1.bf16.msra.mxu0 %v683
    %1287 = vmatprep.subr.bf16.mxu0 0
    %1288 = vmatpush1.bf16.msra.mxu0 %v686
    %1289 = vmatprep.subr.bf16.mxu0 0
    %1290 = vmatpush1.bf16.msra.mxu0 %v689
    %1291 = vmatprep.subr.bf16.mxu0 0
    %1292 = vmatpush1.bf16.msra.mxu0 %v692
    %1293 = vmatprep.subr.bf16.mxu0 0
    %1294 = vmatpush1.bf16.msra.mxu0 %v695
    %1295 = vmatprep.subr.bf16.mxu0 0
    %1296 = vmatpush1.bf16.msra.mxu0 %v698
    %1297 = vmatprep.subr.bf16.mxu0 0
    %1298 = vmatpush1.bf16.msra.mxu0 %v701
    %1299 = vmatprep.subr.bf16.mxu0 0
    %1300 = vmatpush1.bf16.msra.mxu0 %v704
    %1301 = vmatprep.subr.bf16.mxu0 0
    %1302 = vmatpush1.bf16.msra.mxu0 0
    %1303 = vmatprep.subr.bf16.mxu0 0
    %1304 = vmatpush1.bf16.msra.mxu0 0
    %1305 = vmatprep.subr.bf16.mxu0 0
    %1306 = vmatpush1.bf16.msra.mxu0 0
    %1307 = vmatprep.subr.bf16.mxu0 0
    %1308 = vmatpush1.bf16.msra.mxu0 0
    %1309 = vmatprep.subr.bf16.mxu0 0
    %1310 = vmatpush1.bf16.msra.mxu0 0
    %1311 = vmatprep.subr.bf16.mxu0 0
    %1312 = vmatpush1.bf16.msra.mxu0 0
    %1313 = vmatprep.subr.bf16.mxu0 0
    %1314 = vmatpush1.bf16.msra.mxu0 0
    %1315 = vmatprep.subr.bf16.mxu0 0
    %1316 = vmatpush1.bf16.msra.mxu0 0
    %1317 = vmatprep.mubr.bf16.mxu0 0
    %1318 = vmatmul.mubr.bf16.gmra.mrb[0].mxu0 %v1243
    %v1319 = vpop.f32.mrb[0].mxu0
    %v1320 = vadd.f32 0.0, %v1319
    %v1321 = vpop.f32.mrb[0].mxu0
    %v1322 = vpop.f32.mrb[0].mxu0
    %v1323 = vpop.f32.mrb[0].mxu0
    %1324 = vdwg.mxu0
    %v1325 = vadd.f32 %v429, %v1279
    %v1326 = vxor.u32 %v1325, 2147483648
    %v1327 = vmul.f32 %v1326, 1.442695
    %v1328 = vpow.pop %v1327
    %v1329 = vadd.f32 %v1328, 1.0
    %v1330 = vrcp.pop %v1329
    %v1331 = vmul.f32 1.0, %v1330
    %v1332 = vadd.f32 %v431, %v1281
    %v1333 = vxor.u32 %v1332, 2147483648
    %v1334 = vmul.f32 %v1333, 1.442695
    %v1335 = vpow.pop %v1334
    %v1336 = vadd.f32 %v1335, 1.0
    %v1337 = vrcp.pop %v1336
    %v1338 = vmul.f32 1.0, %v1337
    %v1339 = vadd.f32 %v1320, %v549
    %v1340 = vmul.f32 %v1331, %v1339
    %v1341 = vadd.f32 %v536, %v1340
    %v1342 = vtanh.pop %v1341
    %v1343 = vsub.f32 %v1242, %v1342
    %v1344 = vmul.f32 %v1338, %v1343
    %v1345 = vadd.f32 %v1342, %v1344
    %v1346 = vpack.c.bf16 %v1345, %v1345
    %1347 = vmatprep.subr.bf16.mxu0 %v682
    %1348 = vmatpush1.bf16.msra.mxu0 %v681
    %1349 = vmatprep.subr.bf16.mxu0 %v685
    %1350 = vmatpush1.bf16.msra.mxu0 %v684
    %1351 = vmatprep.subr.bf16.mxu0 %v688
    %1352 = vmatpush1.bf16.msra.mxu0 %v687
    %1353 = vmatprep.subr.bf16.mxu0 %v691
    %1354 = vmatpush1.bf16.msra.mxu0 %v690
    %1355 = vmatprep.subr.bf16.mxu0 %v694
    %1356 = vmatpush1.bf16.msra.mxu0 %v693
    %1357 = vmatprep.subr.bf16.mxu0 %v697
    %1358 = vmatpush1.bf16.msra.mxu0 %v696
    %1359 = vmatprep.subr.bf16.mxu0 %v700
    %1360 = vmatpush1.bf16.msra.mxu0 %v699
    %1361 = vmatprep.subr.bf16.mxu0 %v703
    %1362 = vmatpush1.bf16.msra.mxu0 %v702
    %1363 = vmatprep.subr.bf16.mxu0 0
    %1364 = vmatpush1.bf16.msra.mxu0 0
    %1365 = vmatprep.subr.bf16.mxu0 0
    %1366 = vmatpush1.bf16.msra.mxu0 0
    %1367 = vmatprep.subr.bf16.mxu0 0
    %1368 = vmatpush1.bf16.msra.mxu0 0
    %1369 = vmatprep.subr.bf16.mxu0 0
    %1370 = vmatpush1.bf16.msra.mxu0 0
    %1371 = vmatprep.subr.bf16.mxu0 0
    %1372 = vmatpush1.bf16.msra.mxu0 0
    %1373 = vmatprep.subr.bf16.mxu0 0
    %1374 = vmatpush1.bf16.msra.mxu0 0
    %1375 = vmatprep.subr.bf16.mxu0 0
    %1376 = vmatpush1.bf16.msra.mxu0 0
    %1377 = vmatprep.subr.bf16.mxu0 0
    %1378 = vmatpush1.bf16.msra.mxu0 0
    %1379 = vmatprep.mubr.bf16.mxu0 0
    %1380 = vmatmul.mubr.bf16.gmra.mrb[0].mxu0 %v1346
    %v1381 = vpop.f32.mrb[0].mxu0
    %v1382 = vadd.f32 0.0, %v1381
    %v1383 = vpop.f32.mrb[0].mxu0
    %v1384 = vadd.f32 0.0, %v1383
    %v1385 = vpop.f32.mrb[0].mxu0
    %v1386 = vpop.f32.mrb[0].mxu0
    %1387 = vdwg.mxu0
    %1388 = vmatprep.subr.bf16.mxu0 0
    %1389 = vmatpush1.bf16.msra.mxu0 %v683
    %1390 = vmatprep.subr.bf16.mxu0 0
    %1391 = vmatpush1.bf16.msra.mxu0 %v686
    %1392 = vmatprep.subr.bf16.mxu0 0
    %1393 = vmatpush1.bf16.msra.mxu0 %v689
    %1394 = vmatprep.subr.bf16.mxu0 0
    %1395 = vmatpush1.bf16.msra.mxu0 %v692
    %1396 = vmatprep.subr.bf16.mxu0 0
    %1397 = vmatpush1.bf16.msra.mxu0 %v695
    %1398 = vmatprep.subr.bf16.mxu0 0
    %1399 = vmatpush1.bf16.msra.mxu0 %v698
    %1400 = vmatprep.subr.bf16.mxu0 0
    %1401 = vmatpush1.bf16.msra.mxu0 %v701
    %1402 = vmatprep.subr.bf16.mxu0 0
    %1403 = vmatpush1.bf16.msra.mxu0 %v704
    %1404 = vmatprep.subr.bf16.mxu0 0
    %1405 = vmatpush1.bf16.msra.mxu0 0
    %1406 = vmatprep.subr.bf16.mxu0 0
    %1407 = vmatpush1.bf16.msra.mxu0 0
    %1408 = vmatprep.subr.bf16.mxu0 0
    %1409 = vmatpush1.bf16.msra.mxu0 0
    %1410 = vmatprep.subr.bf16.mxu0 0
    %1411 = vmatpush1.bf16.msra.mxu0 0
    %1412 = vmatprep.subr.bf16.mxu0 0
    %1413 = vmatpush1.bf16.msra.mxu0 0
    %1414 = vmatprep.subr.bf16.mxu0 0
    %1415 = vmatpush1.bf16.msra.mxu0 0
    %1416 = vmatprep.subr.bf16.mxu0 0
    %1417 = vmatpush1.bf16.msra.mxu0 0
    %1418 = vmatprep.subr.bf16.mxu0 0
    %1419 = vmatpush1.bf16.msra.mxu0 0
    %1420 = vmatprep.mubr.bf16.mxu0 0
    %1421 = vmatmul.mubr.bf16.gmra.mrb[0].mxu0 %v1346
    %v1422 = vpop.f32.mrb[0].mxu0
    %v1423 = vadd.f32 0.0, %v1422
    %v1424 = vpop.f32.mrb[0].mxu0
    %v1425 = vpop.f32.mrb[0].mxu0
    %v1426 = vpop.f32.mrb[0].mxu0
    %1427 = vdwg.mxu0
    %v1428 = vadd.f32 %v435, %v1382
    %v1429 = vxor.u32 %v1428, 2147483648
    %v1430 = vmul.f32 %v1429, 1.442695
    %v1431 = vpow.pop %v1430
    %v1432 = vadd.f32 %v1431, 1.0
    %v1433 = vrcp.pop %v1432
    %v1434 = vmul.f32 1.0, %v1433
    %v1435 = vadd.f32 %v437, %v1384
    %v1436 = vxor.u32 %v1435, 2147483648
    %v1437 = vmul.f32 %v1436, 1.442695
    %v1438 = vpow.pop %v1437
    %v1439 = vadd.f32 %v1438, 1.0
    %v1440 = vrcp.pop %v1439
    %v1441 = vmul.f32 1.0, %v1440
    %v1442 = vadd.f32 %v1423, %v549
    %v1443 = vmul.f32 %v1434, %v1442
    %v1444 = vadd.f32 %v541, %v1443
    %v1445 = vtanh.pop %v1444
    %v1446 = vsub.f32 %v1345, %v1445
    %v1447 = vmul.f32 %v1441, %v1446
    %v1448 = vadd.f32 %v1445, %v1447
    %1449 = vst [vmem:[#allocation11] sm:$0x3] %v1448
    %v1450 = vld [vmem:[%s2] sm:$0xff]
    %v1451 = vld [vmem:[%s2 + $0x8] sm:$0xff]
    %vm1452 = vcmask 523264
    %v1454 = vsel %vm1452, %v1450, 0
    %v1457 = vsel %vm1452, %v1451, 0
    %1459 = vmatprep.subr.mxu0 0.0
    %1460 = vmatpush1.msra.mxu0 %v599
    %1461 = vmatprep.subr.mxu0 0.0
    %1462 = vmatpush1.msra.mxu0 %v830
    %1463 = vmatprep.subr.mxu0 0.0
    %1464 = vmatpush1.msra.mxu0 %v933
    %1465 = vmatprep.subr.mxu0 0.0
    %1466 = vmatpush1.msra.mxu0 %v1036
    %1467 = vmatprep.subr.mxu0 0.0
    %1468 = vmatpush1.msra.mxu0 %v1139
    %1469 = vmatprep.subr.mxu0 0.0
    %1470 = vmatpush1.msra.mxu0 %v1242
    %1471 = vmatprep.subr.mxu0 0.0
    %1472 = vmatpush1.msra.mxu0 %v1345
    %1473 = vmatprep.subr.mxu0 0.0
    %1474 = vmatpush1.msra.mxu0 %v1448
    %1475 = vmatprep.subr.mxu0 0.0
    %1476 = vmatpush1.msra.mxu0 0.0
    %1477 = vmatprep.subr.mxu0 0.0
    %1478 = vmatpush1.msra.mxu0 0.0
    %1479 = vmatprep.subr.mxu0 0.0
    %1480 = vmatpush1.msra.mxu0 0.0
    %1481 = vmatprep.subr.mxu0 0.0
    %1482 = vmatpush1.msra.mxu0 0.0
    %1483 = vmatprep.subr.mxu0 0.0
    %1484 = vmatpush1.msra.mxu0 0.0
    %1485 = vmatprep.subr.mxu0 0.0
    %1486 = vmatpush1.msra.mxu0 0.0
    %1487 = vmatprep.subr.mxu0 0.0
    %1488 = vmatpush1.msra.mxu0 0.0
    %1489 = vmatprep.subr.mxu0 0.0
    %1490 = vmatpush1.msra.mxu0 0.0
    %1491 = vmatprep.subr.mxu0 0.0
    %1492 = vmatpush1.msra.mxu0 0.0
    %1493 = vmatprep.subr.mxu0 0.0
    %1494 = vmatpush1.msra.mxu0 0.0
    %1495 = vmatprep.subr.mxu0 0.0
    %1496 = vmatpush1.msra.mxu0 0.0
    %1497 = vmatprep.subr.mxu0 0.0
    %1498 = vmatpush1.msra.mxu0 0.0
    %1499 = vmatprep.subr.mxu0 0.0
    %1500 = vmatpush1.msra.mxu0 0.0
    %1501 = vmatprep.subr.mxu0 0.0
    %1502 = vmatpush1.msra.mxu0 0.0
    %1503 = vmatprep.subr.mxu0 0.0
    %1504 = vmatpush1.msra.mxu0 0.0
    %1505 = vmatprep.subr.mxu0 0.0
    %1506 = vmatpush1.msra.mxu0 0.0
    %1507 = vmatprep.subr.mxu0 0.0
    %1508 = vmatpush1.msra.mxu0 0.0
    %1509 = vmatprep.subr.mxu0 0.0
    %1510 = vmatpush1.msra.mxu0 0.0
    %1511 = vmatprep.subr.mxu0 0.0
    %1512 = vmatpush1.msra.mxu0 0.0
    %1513 = vmatprep.subr.mxu0 0.0
    %1514 = vmatpush1.msra.mxu0 0.0
    %1515 = vmatprep.subr.mxu0 0.0
    %1516 = vmatpush1.msra.mxu0 0.0
    %1517 = vmatprep.subr.mxu0 0.0
    %1518 = vmatpush1.msra.mxu0 0.0
    %1519 = vmatprep.subr.mxu0 0.0
    %1520 = vmatpush1.msra.mxu0 0.0
    %1521 = vmatprep.subr.mxu0 0.0
    %1522 = vmatpush1.msra.mxu0 0.0
    %1523 = vmatprep.mubr.f32.mxu0 0.0
    %1524 = vmatmul.mubr.f32.gmra.mrb[0].mxu0 %v1454
    %v1525 = vpop.f32.mrb[0].mxu0
    %v1526 = vadd.f32 0.0, %v1525
    %v1527 = vpop.f32.mrb[0].mxu0
    %1528 = vmatprep.mubr.f32.mxu0 0.0
    %1529 = vmatmul.mubr.f32.gmra.mrb[0].mxu0 %v1457
    %v1530 = vpop.f32.mrb[0].mxu0
    %v1531 = vadd.f32 0.0, %v1530
    %v1532 = vpop.f32.mrb[0].mxu0
    %1533 = vdwg.mxu0
    %v1534 = vld [vmem:[%s7] sm:$0xff]
    %v1535 = vld [vmem:[%s7 + $0x8] sm:$0xff]
    %v1536 = vld [vmem:[%s7 + $0x10] sm:$0xff]
    %v1537 = vld [vmem:[%s7 + $0x18] sm:$0xff]
    %v1538 = vld [vmem:[%s7 + $0x20] sm:$0xff]
    %v1539 = vld [vmem:[%s7 + $0x28] sm:$0xff]
    %v1540 = vld [vmem:[%s7 + $0x30] sm:$0xff]
    %v1541 = vld [vmem:[%s7 + $0x38] sm:$0xff]
    %v1542 = vld [vmem:[%s7 + $0x40] sm:$0xff]
    %v1543 = vld [vmem:[%s7 + $0x48] sm:$0xff]
    %v1544 = vld [vmem:[%s7 + $0x50] sm:$0xff]
    %v1545 = vld [vmem:[%s7 + $0x58] sm:$0xff]
    %v1546 = vld [vmem:[%s7 + $0x60] sm:$0xff]
    %v1547 = vld [vmem:[%s7 + $0x68] sm:$0xff]
    %v1548 = vld [vmem:[%s7 + $0x70] sm:$0xff]
    %v1549 = vld [vmem:[%s7 + $0x78] sm:$0xff]
    %v1550 = vld [vmem:[%s8] sm:$0x1]
    %v1552 = vlaneseq
    %v1553 = vshrl.u32 %v1552, 7
    %v1554 = vsub.s32 0, %v1553
    %v1555 = vrot.slane %v1550, %v1554
    %1557 = vmatprep.subr.mxu0 0.0
    %1558 = vmatpush1.msra.mxu0 %v1534
    %1559 = vmatprep.subr.mxu0 0.0
    %1560 = vmatpush1.msra.mxu0 %v1535
    %1561 = vmatprep.subr.mxu0 0.0
    %1562 = vmatpush1.msra.mxu0 %v1536
    %1563 = vmatprep.subr.mxu0 0.0
    %1564 = vmatpush1.msra.mxu0 %v1537
    %1565 = vmatprep.subr.mxu0 0.0
    %1566 = vmatpush1.msra.mxu0 %v1538
    %1567 = vmatprep.subr.mxu0 0.0
    %1568 = vmatpush1.msra.mxu0 %v1539
    %1569 = vmatprep.subr.mxu0 0.0
    %1570 = vmatpush1.msra.mxu0 %v1540
    %1571 = vmatprep.subr.mxu0 0.0
    %1572 = vmatpush1.msra.mxu0 %v1541
    %1573 = vmatprep.subr.mxu0 0.0
    %1574 = vmatpush1.msra.mxu0 %v1542
    %1575 = vmatprep.subr.mxu0 0.0
    %1576 = vmatpush1.msra.mxu0 %v1543
    %1577 = vmatprep.subr.mxu0 0.0
    %1578 = vmatpush1.msra.mxu0 %v1544
    %1579 = vmatprep.subr.mxu0 0.0
    %1580 = vmatpush1.msra.mxu0 %v1545
    %1581 = vmatprep.subr.mxu0 0.0
    %1582 = vmatpush1.msra.mxu0 %v1546
    %1583 = vmatprep.subr.mxu0 0.0
    %1584 = vmatpush1.msra.mxu0 %v1547
    %1585 = vmatprep.subr.mxu0 0.0
    %1586 = vmatpush1.msra.mxu0 %v1548
    %1587 = vmatprep.subr.mxu0 0.0
    %1588 = vmatpush1.msra.mxu0 %v1549
    %1589 = vmatprep.subr.mxu0 0.0
    %1590 = vmatpush1.msra.mxu0 0.0
    %1591 = vmatprep.subr.mxu0 0.0
    %1592 = vmatpush1.msra.mxu0 0.0
    %1593 = vmatprep.subr.mxu0 0.0
    %1594 = vmatpush1.msra.mxu0 0.0
    %1595 = vmatprep.subr.mxu0 0.0
    %1596 = vmatpush1.msra.mxu0 0.0
    %1597 = vmatprep.subr.mxu0 0.0
    %1598 = vmatpush1.msra.mxu0 0.0
    %1599 = vmatprep.subr.mxu0 0.0
    %1600 = vmatpush1.msra.mxu0 0.0
    %1601 = vmatprep.subr.mxu0 0.0
    %1602 = vmatpush1.msra.mxu0 0.0
    %1603 = vmatprep.subr.mxu0 0.0
    %1604 = vmatpush1.msra.mxu0 0.0
    %1605 = vmatprep.subr.mxu0 0.0
    %1606 = vmatpush1.msra.mxu0 0.0
    %1607 = vmatprep.subr.mxu0 0.0
    %1608 = vmatpush1.msra.mxu0 0.0
    %1609 = vmatprep.subr.mxu0 0.0
    %1610 = vmatpush1.msra.mxu0 0.0
    %1611 = vmatprep.subr.mxu0 0.0
    %1612 = vmatpush1.msra.mxu0 0.0
    %1613 = vmatprep.subr.mxu0 0.0
    %1614 = vmatpush1.msra.mxu0 0.0
    %1615 = vmatprep.subr.mxu0 0.0
    %1616 = vmatpush1.msra.mxu0 0.0
    %1617 = vmatprep.subr.mxu0 0.0
    %1618 = vmatpush1.msra.mxu0 0.0
    %1619 = vmatprep.subr.mxu0 0.0
    %1620 = vmatpush1.msra.mxu0 0.0
    %1621 = vmatprep.mubr.f32.mxu0 0.0
    %1622 = vmatmul.mubr.f32.gmra.mrb[0].mxu0 %v1526
    %v1623 = vpop.f32.mrb[0].mxu0
    %v1624 = vadd.f32 %v1555, %v1623
    %v1625 = vpop.f32.mrb[0].mxu0
    %1626 = vmatprep.mubr.f32.mxu0 0.0
    %1627 = vmatmul.mubr.f32.gmra.mrb[0].mxu0 %v1531
    %v1628 = vpop.f32.mrb[0].mxu0
    %v1629 = vadd.f32 %v1555, %v1628
    %v1630 = vpop.f32.mrb[0].mxu0
    %1631 = vdwg.mxu0
    %vm1632 = vcmask 416768
    %1633 = vst.msk [vmem:[#allocation10] sm:$0xff] %vm1632, %v1624
    %1634 = vst.msk [vmem:[#allocation10 + $0x8] sm:$0xff] %vm1632, %v1629
    // Predicated region
    $region54: #{pose_lifter_forward.1} parent=1 // pred_check
      _
    $region55: #{pose_lifter_forward.1} parent=1 // pred_check_branch
      %1636 = sbr.rel (0) target = $region57
    $region56: #{pose_lifter_forward.1} parent=1 // pred_region
      %s1638 = ssub.s32 256, 256
      %1639 = vsyncadd [#allocation4], %s1638
      %s1640 = sshll.u32 [#allocation10], 4
      %s1641 = int_to_ptr.vmem [resolvable:$true] %s1640
      %1646 = dma.vmem_to_hbm [thread:$0]  %s1641, 256, %s9, [#allocation4], 128, 128, 8
    $region57: #{pose_lifter_forward.1} parent=1 // pred_fallthru
      _
    // Predicated region
    $region58: #{pose_lifter_forward.1} parent=1 // pred_check
      _
    $region59: #{pose_lifter_forward.1} parent=1 // pred_check_branch
      %1648 = sbr.rel (0) target = $region61
    $region60: #{pose_lifter_forward.1} parent=1 // pred_region
      %s1650 = ssub.s32 32, 32
      %1651 = vsyncadd [#allocation12], %s1650
      %s1653 = sshll.u32 [#allocation11], 4
      %s1654 = int_to_ptr.vmem [resolvable:$true] %s1653
      %1656 = dma.vmem_to_hbm [thread:$0]  %s1654, 32, %s10, [#allocation12]
    $region61: #{pose_lifter_forward.1} parent=1 // pred_fallthru
      _
    // Predicated region
    $region62: #{pose_lifter_forward.1} parent=1 // pred_check
      _
    $region63: #{pose_lifter_forward.1} parent=1 // pred_check_branch
      %1658 = sbr.rel (0) target = $region65
    $region64: #{pose_lifter_forward.1} parent=1 // pred_region
      %1659 = dma.done [#allocation4], 256
    $region65: #{pose_lifter_forward.1} parent=1 // pred_fallthru
      _
    // Predicated region
    $region66: #{pose_lifter_forward.1} parent=1 // pred_check
      _
    $region67: #{pose_lifter_forward.1} parent=1 // pred_check_branch
      %1661 = sbr.rel (0) target = $region69
    $region68: #{pose_lifter_forward.1} parent=1 // pred_region
      %1662 = dma.done [#allocation12], 32
    $region69: #{pose_lifter_forward.1} parent=1 // pred_fallthru
      _
    %1663 = vsyncpa [#allocation3], 1
    %1664 = vsyncpa [#allocation6], 1
    %1665 = vsyncpa [#allocation9], 1
    %1666 = vsyncpa [#allocation4], 1
    %1667 = vsyncpa [#allocation12], 1

</llo_original>
